<compile_context>
chip_gen: v5e
topology: v5e:2x2
jax: 0.10.0
libtpu: 0.0.40
codegen_flags: <defaults>
</compile_context>

<pallas_src>
import functools

import jax
import jax.numpy as jnp
from jax import lax
from jax.experimental import pallas as pl
from jax.experimental.pallas import tpu as pltpu


# ---------------------------------------------------------------------------
# Phase 1: norm1 -> conv1 -> dilated 3x3 depthwise -> SimpleGate, + pooled sums
# ---------------------------------------------------------------------------
def nafblock_phase1_kernel(xh_ref, w1_ref, dww_ref, b_ref, g_ref, psum_ref,
                           *, th, d, H, W, C, eps):
    rows = th + 2 * d
    DW = 2 * C
    i = pl.program_id(1)

    xb = xh_ref[0, 0].astype(jnp.float32)                 # (rows, W, C)
    x2 = xb.reshape(rows * W, C)

    # norm1: single-pass moments (clamped) + rsqrt on the EUP; affine folded into w1.
    mu = jnp.mean(x2, axis=-1, keepdims=True)
    var = jnp.maximum(jnp.mean(x2 * x2, axis=-1, keepdims=True) - mu * mu, 0.0)
    xn = (x2 - mu) * lax.rsqrt(var + eps)

    # conv1: 1x1, C -> 2C on the MXU (bf16 operands, f32 accumulation).
    h = jnp.dot(xn.astype(jnp.bfloat16), w1_ref[...],
                preferred_element_type=jnp.float32) + b_ref[0:1, :]

    # Zero the halo rows that fall outside the image (conv2 zero padding).  The
    # mask is built from a 2-D sublane iota (pixel index), avoiding division and
    # leading-dim iota: pixel // W < m  <=>  pixel < m * W.
    pix = lax.broadcasted_iota(jnp.int32, (rows * W, 1), 0)
    lo = (d - i * th) * W
    hi = (H + d - i * th) * W
    h = jnp.where(jnp.logical_and(pix >= lo, pix < hi), h, 0.0)
    h = h.reshape(rows, W, DW)

    # conv2: 3x3 depthwise, dilation=d.  Row taps are leading-dim slices of the
    # in-register band; column taps are in-register shifts built by concatenating
    # with zero columns (no pad scratch, no misaligned VMEM accesses).
    zcol = jnp.zeros((th, d, DW), jnp.float32)
    acc = None
    for ki in range(3):
        band = h[ki * d: ki * d + th]                      # (th, W, DW)
        taps = (
            jnp.concatenate([zcol, band[:, :W - d, :]], axis=1),   # out[c] = h[c-d]
            band,                                                   # out[c] = h[c]
            jnp.concatenate([band[:, d:, :], zcol], axis=1),        # out[c] = h[c+d]
        )
        for kj in range(3):
            contrib = taps[kj] * dww_ref[ki * 3 + kj]
            # First tap folds in the depthwise bias (no zeros-init / extra add pass).
            acc = (contrib + b_ref[1]) if acc is None else acc + contrib

    # SimpleGate: split channels in half and multiply.
    g = acc[:, :, :C] * acc[:, :, C:]                      # (th, W, C)
    g_ref[0] = g.astype(g_ref.dtype)
    # Per-tile pooled partial sum (finished + SCA conv in the wrapper).
    psum_ref[...] = jnp.sum(g.reshape(th * W, C), axis=0).reshape(1, 1, 1, C)


# ---------------------------------------------------------------------------
# Phase 2: g*sca -> conv3 -> residual -> norm2 -> conv4 -> gate -> conv5 -> residual
# ---------------------------------------------------------------------------
def nafblock_phase2_kernel(x_ref, g_ref, sca_ref, w4_ref, wcc_ref, b4_ref, bc_ref,
                           out_ref, *, th, W, C, eps):
    HW = th * W
    x2 = x_ref[0].astype(jnp.float32).reshape(HW, C)
    g2 = g_ref[0].astype(jnp.float32).reshape(HW, C) * sca_ref[0]    # (HW, C)

    # conv3: 1x1 C -> C (beta folded into weights/bias).
    x3 = jnp.dot(g2.astype(jnp.bfloat16), wcc_ref[0],
                 preferred_element_type=jnp.float32) + bc_ref[0:1, :]
    y = x2 + x3                                            # residual 1

    # norm2 (affine folded into conv4).
    mu = jnp.mean(y, axis=-1, keepdims=True)
    var = jnp.maximum(jnp.mean(y * y, axis=-1, keepdims=True) - mu * mu, 0.0)
    yn = (y - mu) * lax.rsqrt(var + eps)

    # FFN: conv4 (C->2C) -> SimpleGate -> conv5 (C->C, gamma folded).
    f = jnp.dot(yn.astype(jnp.bfloat16), w4_ref[...],
                preferred_element_type=jnp.float32) + b4_ref[...]
    f = f[:, :C] * f[:, C:]
    f = jnp.dot(f.astype(jnp.bfloat16), wcc_ref[1],
                preferred_element_type=jnp.float32) + bc_ref[1:2, :]

    out_ref[0] = (y + f).reshape(th, W, C).astype(out_ref.dtype)     # residual 2


# ---------------------------------------------------------------------------
# Wrapper
# ---------------------------------------------------------------------------
def _pack_params(p):
    """Fold LN affines / beta / gamma into the 1x1 conv weights; pre-cast the MXU
    operands to bf16; keep depthwise / bias terms in f32."""
    f32 = jnp.float32
    # norm1 affine -> conv1:  (LN*n1w + n1b)@w1 + b1 == LN@(n1w^T*w1) + (n1b@w1 + b1)
    w1 = (p["w1"] * p["n1w"].T).astype(jnp.bfloat16)                 # (C, 2C)
    b1 = (p["n1b"] @ p["w1"] + p["b1"]).astype(f32)                  # (1, 2C)
    b1dw = jnp.concatenate([b1, p["dwb"].astype(f32)], axis=0)       # (2, 2C)
    dww = p["dww"].astype(f32)                                       # (9, 2C)
    # norm2 affine -> conv4
    w4 = (p["w4"] * p["n2w"].T).astype(jnp.bfloat16)                 # (C, 2C)
    b4 = (p["n2b"] @ p["w4"] + p["b4"]).astype(f32)                  # (1, 2C)
    # beta -> conv3, gamma -> conv5 (scale output channels)
    w3 = p["w3"] * p["beta"]
    b3 = p["b3"] * p["beta"]
    w5 = p["w5"] * p["gamma"]
    b5 = p["b5"] * p["gamma"]
    wcc = jnp.stack([w3, w5]).astype(jnp.bfloat16)                   # (2, C, C)
    bcc = jnp.concatenate([b3, b5], axis=0).astype(f32)              # (2, C)
    return dict(w1=w1, b1dw=b1dw, dww=dww, w4=w4, b4=b4, wcc=wcc, bcc=bcc,
                scaw=p["scaw"].astype(f32), scab=p["scab"].astype(f32))


def _vmem_limit_bytes():
    """Per-generation scoped-VMEM budget (review): leave headroom on v7x's 64 MiB/TC,
    raise well above the 16/32 MiB default scoped limit on v5e/v6e."""
    try:
        kind = jax.devices()[0].device_kind.lower()
    except Exception:
        return None
    if "v7" in kind:
        return 48 * 1024 * 1024
    if "v5" in kind or "v6" in kind:
        return 100 * 1024 * 1024
    return None


def _choose_row_tile(H, W, C, row_tile, vmem_limit):
    """Pick a row tile that divides H; default sizes it to a few-MiB working set."""
    if row_tile is None:
        budget = (vmem_limit or (64 * 1024 * 1024)) // 8
        per_row = W * 4 * (C + 4 * 2 * C)          # x band + h + acc + temps (f32)
        row_tile = max(8, min(H, budget // max(per_row, 1)))
        row_tile -= row_tile % 8
        row_tile = max(row_tile, 1)
    th = min(row_tile, H)
    while H % th != 0:
        th -= 1
    return max(th, 1)


def nafblock_pallas(x_nhwc, p, *, dilation, eps=1e-6, row_tile=None):
    N, H, W, C = x_nhwc.shape
    d = dilation
    DW = 2 * C
    vmem_limit = _vmem_limit_bytes()
    th = _choose_row_tile(H, W, C, row_tile, vmem_limit)
    HT = H // th
    rows = th + 2 * d
    pk = _pack_params(p)

    # Halo-inclusive row bands built wrapper-side (layout plumbing): band i holds
    # rows [i*th - d, i*th + th + d) of x, zero padded at the image edges, so the
    # phase-1 kernel recomputes the h halo rows locally (pointwise, cheap) with a
    # fully auto-pipelined BlockSpec — no manual DMA, no pad scratch.
    x_pad = jnp.pad(x_nhwc, ((0, 0), (d, d), (0, 0), (0, 0)))
    x_halo = jnp.stack(
        [lax.slice_in_dim(x_pad, i * th, i * th + rows, axis=1) for i in range(HT)],
        axis=1)                                              # (N, HT, rows, W, C)

    cparams = pltpu.CompilerParams(
        dimension_semantics=("parallel", "parallel"),
        vmem_limit_bytes=vmem_limit)

    px = N * H * W
    param_bytes1 = sum(int(pk[k].size) * pk[k].dtype.itemsize
                       for k in ("w1", "dww", "b1dw"))
    cost1 = pl.CostEstimate(
        flops=px * (2 * C * DW + 18 * DW + 10 * C),
        transcendentals=px,
        bytes_accessed=int(x_halo.size) * 4 + px * C * 4 + param_bytes1)

    kernel1 = functools.partial(nafblock_phase1_kernel,
                                th=th, d=d, H=H, W=W, C=C, eps=eps)
    g, psum = pl.pallas_call(
        kernel1,
        out_shape=(jax.ShapeDtypeStruct((N, H, W, C), jnp.float32),
                   jax.ShapeDtypeStruct((N, HT, 1, C), jnp.float32)),
        grid_spec=pltpu.PrefetchScalarGridSpec(
            num_scalar_prefetch=0,
            grid=(N, HT),
            in_specs=[
                pl.BlockSpec((1, 1, rows, W, C), lambda n, i: (n, i, 0, 0, 0)),
                pl.BlockSpec(pk["w1"].shape, lambda n, i: (0, 0)),
                pl.BlockSpec(pk["dww"].shape, lambda n, i: (0, 0)),
                pl.BlockSpec(pk["b1dw"].shape, lambda n, i: (0, 0)),
            ],
            out_specs=[
                pl.BlockSpec((1, th, W, C), lambda n, i: (n, i, 0, 0)),
                pl.BlockSpec((1, 1, 1, C), lambda n, i: (n, i, 0, 0)),
            ]),
        compiler_params=cparams,
        cost_estimate=cost1,
    )(x_halo, pk["w1"], pk["dww"], pk["b1dw"])

    # SCA between phases: finish the global average pool and apply the tiny
    # (N,C)@(C,C) pointwise conv in plain JAX (off the MXU).
    pooled = jnp.sum(psum, axis=1)[:, 0, :] / float(H * W)            # (N, C)
    sca = (pooled @ pk["scaw"] + pk["scab"]).reshape(N, 1, C).astype(jnp.float32)

    param_bytes2 = sum(int(pk[k].size) * pk[k].dtype.itemsize
                       for k in ("w4", "wcc", "b4", "bcc"))
    cost2 = pl.CostEstimate(
        flops=px * (4 * C * C + 2 * C * DW + 10 * C),
        transcendentals=px,
        bytes_accessed=3 * px * C * 4 + param_bytes2)

    kernel2 = functools.partial(nafblock_phase2_kernel, th=th, W=W, C=C, eps=eps)
    out = pl.pallas_call(
        kernel2,
        out_shape=jax.ShapeDtypeStruct((N, H, W, C), x_nhwc.dtype),
        grid_spec=pltpu.PrefetchScalarGridSpec(
            num_scalar_prefetch=0,
            grid=(N, HT),
            in_specs=[
                pl.BlockSpec((1, th, W, C), lambda n, i: (n, i, 0, 0)),   # x
                pl.BlockSpec((1, th, W, C), lambda n, i: (n, i, 0, 0)),   # g
                pl.BlockSpec((1, 1, C), lambda n, i: (n, 0, 0)),          # sca
                pl.BlockSpec(pk["w4"].shape, lambda n, i: (0, 0)),
                pl.BlockSpec(pk["wcc"].shape, lambda n, i: (0, 0, 0)),
                pl.BlockSpec(pk["b4"].shape, lambda n, i: (0, 0)),
                pl.BlockSpec(pk["bcc"].shape, lambda n, i: (0, 0)),
            ],
            out_specs=pl.BlockSpec((1, th, W, C), lambda n, i: (n, i, 0, 0))),
        compiler_params=cparams,
        cost_estimate=cost2,
    )(x_nhwc, g, sca, pk["w4"], pk["wcc"], pk["b4"], pk["bcc"])
    return out


# ---------------------------------------------------------------------------
# Pure-JAX reference (same math as the PyTorch module, f32 end to end)
# ---------------------------------------------------------------------------
def nafblock_ref(x, p, *, dilation, eps=1e-6):
    N, H, W, C = x.shape

    def ln(v, w, b):
        mu = v.mean(-1, keepdims=True)
        var = ((v - mu) ** 2).mean(-1, keepdims=True)
        return (v - mu) / jnp.sqrt(var + eps) * w + b

    xn = ln(x, p["n1w"], p["n1b"])
    h = jnp.einsum("nhwc,cd->nhwd", xn, p["w1"]) + p["b1"]
    hp = jnp.pad(h, ((0, 0), (dilation, dilation), (dilation, dilation), (0, 0)))
    acc = jnp.zeros_like(h)
    for ki in range(3):
        for kj in range(3):
            acc = acc + hp[:, ki * dilation:ki * dilation + H,
                           kj * dilation:kj * dilation + W, :] * p["dww"][ki * 3 + kj]
    acc = acc + p["dwb"]
    g = acc[..., :C] * acc[..., C:]
    pooled = g.mean(axis=(1, 2), keepdims=True)
    sca = jnp.einsum("nhwc,cd->nhwd", pooled, p["scaw"]) + p["scab"]
    g = g * sca
    x3 = jnp.einsum("nhwc,cd->nhwd", g, p["w3"]) + p["b3"]
    y = x + x3 * p["beta"]
    yn = ln(y, p["n2w"], p["n2b"])
    f = jnp.einsum("nhwc,cd->nhwd", yn, p["w4"]) + p["b4"]
    f = f[..., :C] * f[..., C:]
    f = jnp.einsum("nhwc,cd->nhwd", f, p["w5"]) + p["b5"]
    return y + f * p["gamma"]


def init_params(key, c):
    dw = 2 * c          # DW_Expand = 2
    ffn = 2 * c         # FFN_Expand = 2
    ks = jax.random.split(key, 18)
    f32 = jnp.float32
    nrm = lambda k, s, scale: scale * jax.random.normal(k, s, f32)
    return {
        # LayerNorm2d affine (perturbed so the weight-folding path is exercised)
        "n1w": 1.0 + nrm(ks[12], (1, c), 0.1), "n1b": nrm(ks[13], (1, c), 0.1),
        "n2w": 1.0 + nrm(ks[14], (1, c), 0.1), "n2b": nrm(ks[15], (1, c), 0.1),
        # conv1: 1x1 c->2c, weight stored as (Cin, Cout)
        "w1": nrm(ks[0], (c, dw), 0.1), "b1": nrm(ks[1], (1, dw), 0.05),
        # conv2: 3x3 depthwise dilated, weight stored as (9, dw) [k = ki*3+kj]
        "dww": nrm(ks[2], (9, dw), 0.1), "dwb": nrm(ks[3], (1, dw), 0.05),
        # sca pointwise conv c->c
        "scaw": nrm(ks[4], (c, c), 0.1), "scab": nrm(ks[5], (1, c), 0.05),
        # conv3: 1x1 c->c
        "w3": nrm(ks[6], (c, c), 0.1), "b3": nrm(ks[7], (1, c), 0.05),
        # conv4: 1x1 c->ffn, conv5: 1x1 ffn//2 -> c
        "w4": nrm(ks[8], (c, ffn), 0.1), "b4": nrm(ks[9], (1, ffn), 0.05),
        "w5": nrm(ks[10], (ffn // 2, c), 0.1), "b5": nrm(ks[11], (1, c), 0.05),
        # beta / gamma (perturbed to exercise the fold)
        "beta": 1.0 + nrm(ks[16], (1, c), 0.1),
        "gamma": 1.0 + nrm(ks[17], (1, c), 0.1),
    }


if __name__ == "__main__":
    # Small shapes consistent with the module: N=2, C=4, H=W=16.
    N, C, H, W = 2, 4, 16, 16
    dilation = 2                      # conv2 uses padding=dilation -> same size

    key = jax.random.PRNGKey(0)
    kx, kp = jax.random.split(key)
    x_nchw = jax.random.normal(kx, (N, C, H, W), jnp.float32)   # PyTorch layout
    x_nhwc = jnp.transpose(x_nchw, (0, 2, 3, 1))                # kernel layout

    params = init_params(kp, C)

    # row_tile=8 -> 2 row tiles per image: exercises the cross-tile depthwise halo.
    out_nhwc = jax.block_until_ready(
        nafblock_pallas(x_nhwc, params, dilation=dilation, row_tile=8))
    ref_nhwc = nafblock_ref(x_nhwc, params, dilation=dilation)

    assert out_nhwc.shape == (N, H, W, C)
    # Kernel uses bf16 MXU operands with f32 accumulation; compare against the
    # pure-f32 module reference with a tolerance covering the bf16 rounding.
    err = float(jnp.max(jnp.abs(out_nhwc - ref_nhwc)))
    assert err < 1e-2, err

    # back to NCHW to mirror PyTorch output convention
    out_nchw = jnp.transpose(out_nhwc, (0, 3, 1, 2))
    assert out_nchw.shape == x_nchw.shape
    print("KERNEL_OK")
</pallas_src>

<mosaic_0001>
module attributes {stable_mosaic.version = 11 : i64} {
  func.func @nafblock_phase1_kernel(%arg0: i32, %arg1: i32, %arg2: memref<1x1x12x16x4xf32, #tpu.memory_space<vmem>>, %arg3: memref<4x8xbf16, #tpu.memory_space<vmem>>, %arg4: memref<9x8xf32, #tpu.memory_space<vmem>>, %arg5: memref<2x8xf32, #tpu.memory_space<vmem>>, %arg6: memref<1x8x16x4xf32, #tpu.memory_space<vmem>>, %arg7: memref<1x1x1x4xf32, #tpu.memory_space<vmem>>) attributes {dimension_semantics = [#tpu.dimension_semantics<parallel>, #tpu.dimension_semantics<parallel>], iteration_bounds = array<i64: 2, 2>, scalar_prefetch = 0 : i64, scratch_operands = 0 : i64, tpu.core_type = #tpu.core_type<tc>, window_params = [{transform_indices = @transform_0, window_bounds = array<i64: 1, 1, 12, 16, 4>}, {pipeline_mode = #tpu.pipeline_mode<synchronous>, transform_indices = @transform_1, window_bounds = array<i64: 4, 8>}, {pipeline_mode = #tpu.pipeline_mode<synchronous>, transform_indices = @transform_2, window_bounds = array<i64: 9, 8>}, {pipeline_mode = #tpu.pipeline_mode<synchronous>, transform_indices = @transform_3, window_bounds = array<i64: 2, 8>}, {transform_indices = @transform_4, window_bounds = array<i64: 1, 8, 16, 4>}, {transform_indices = @transform_5, window_bounds = array<i64: 1, 1, 1, 4>}]} {
    %c0 = arith.constant 0 : index
    %c0_0 = arith.constant 0 : index
    %c0_1 = arith.constant 0 : index
    %c0_2 = arith.constant 0 : index
    %c0_3 = arith.constant 0 : index
    %0 = vector.load %arg2[%c0, %c0_0, %c0_1, %c0_2, %c0_3] : memref<1x1x12x16x4xf32, #tpu.memory_space<vmem>>, vector<1x1x12x16x4xf32>
    %1 = vector.shape_cast %0 : vector<1x1x12x16x4xf32> to vector<12x16x4xf32>
    %2 = vector.shape_cast %1 : vector<12x16x4xf32> to vector<192x4xf32>
    %cst = arith.constant dense<0.000000e+00> : vector<192xf32>
    %3 = vector.multi_reduction <add>, %2, %cst [1] : vector<192x4xf32> to vector<192xf32>
    %4 = vector.shape_cast %3 : vector<192xf32> to vector<192x1xf32>
    %cst_4 = arith.constant 4.000000e+00 : f32
    %5 = vector.broadcast %cst_4 : f32 to vector<192x1xf32>
    %6 = arith.divf %4, %5 : vector<192x1xf32>
    %7 = arith.mulf %2, %2 : vector<192x4xf32>
    %cst_5 = arith.constant dense<0.000000e+00> : vector<192xf32>
    %8 = vector.multi_reduction <add>, %7, %cst_5 [1] : vector<192x4xf32> to vector<192xf32>
    %9 = vector.shape_cast %8 : vector<192xf32> to vector<192x1xf32>
    %cst_6 = arith.constant 4.000000e+00 : f32
    %10 = vector.broadcast %cst_6 : f32 to vector<192x1xf32>
    %11 = arith.divf %9, %10 : vector<192x1xf32>
    %12 = arith.mulf %6, %6 : vector<192x1xf32>
    %13 = arith.subf %11, %12 : vector<192x1xf32>
    %cst_7 = arith.constant 0.000000e+00 : f32
    %14 = vector.broadcast %cst_7 : f32 to vector<192x1xf32>
    %15 = arith.maximumf %13, %14 : vector<192x1xf32>
    %16 = vector.broadcast %6 : vector<192x1xf32> to vector<192x4xf32>
    %17 = arith.subf %2, %16 : vector<192x4xf32>
    %cst_8 = arith.constant 9.99999997E-7 : f32
    %18 = vector.broadcast %cst_8 : f32 to vector<192x1xf32>
    %19 = arith.addf %15, %18 : vector<192x1xf32>
    %20 = math.rsqrt %19 : vector<192x1xf32>
    %21 = vector.broadcast %20 : vector<192x1xf32> to vector<192x4xf32>
    %22 = arith.mulf %17, %21 : vector<192x4xf32>
    %23 = arith.truncf %22 : vector<192x4xf32> to vector<192x4xbf16>
    %c0_9 = arith.constant 0 : index
    %c0_10 = arith.constant 0 : index
    %24 = vector.load %arg3[%c0_9, %c0_10] : memref<4x8xbf16, #tpu.memory_space<vmem>>, vector<4x8xbf16>
    %cst_11 = arith.constant dense<0.000000e+00> : vector<192x8xf32>
    %25 = tpu.matmul %23, %24, %cst_11 {dimension_numbers = #tpu.dot_dimension_numbers<[1], [0], [0], [1], [0, 0, 1, 1], [], []>} : vector<192x4xbf16>, vector<4x8xbf16>, vector<192x8xf32> -> vector<192x8xf32>
    %c0_12 = arith.constant 0 : index
    %c0_13 = arith.constant 0 : index
    %26 = vector.load %arg5[%c0_12, %c0_13] : memref<2x8xf32, #tpu.memory_space<vmem>>, vector<1x8xf32>
    %27 = vector.broadcast %26 : vector<1x8xf32> to vector<192x8xf32>
    %28 = arith.addf %25, %27 : vector<192x8xf32>
    %29 = tpu.iota {dimensions = array<i32: 0>} : vector<192x1xi32>
    %c8_i32 = arith.constant 8 : i32
    %30 = arith.muli %arg1, %c8_i32 : i32
    %c2_i32 = arith.constant 2 : i32
    %31 = arith.subi %c2_i32, %30 : i32
    %c16_i32 = arith.constant 16 : i32
    %32 = arith.muli %31, %c16_i32 : i32
    %c8_i32_14 = arith.constant 8 : i32
    %33 = arith.muli %arg1, %c8_i32_14 : i32
    %c18_i32 = arith.constant 18 : i32
    %34 = arith.subi %c18_i32, %33 : i32
    %c16_i32_15 = arith.constant 16 : i32
    %35 = arith.muli %34, %c16_i32_15 : i32
    %36 = vector.broadcast %32 : i32 to vector<192x1xi32>
    %37 = arith.cmpi sge, %29, %36 : vector<192x1xi32>
    %38 = vector.broadcast %35 : i32 to vector<192x1xi32>
    %39 = arith.cmpi slt, %29, %38 : vector<192x1xi32>
    %40 = arith.andi %37, %39 : vector<192x1xi1>
    %cst_16 = arith.constant 0.000000e+00 : f32
    %41 = vector.shape_cast %40 : vector<192x1xi1> to vector<192x1xi1>
    %42 = vector.broadcast %41 : vector<192x1xi1> to vector<192x8xi1>
    %43 = vector.broadcast %cst_16 : f32 to vector<192x8xf32>
    %44 = arith.select %42, %28, %43 : vector<192x8xi1>, vector<192x8xf32>
    %45 = vector.shape_cast %44 : vector<192x8xf32> to vector<12x16x8xf32>
    %cst_17 = arith.constant 0.000000e+00 : f32
    %46 = vector.broadcast %cst_17 : f32 to vector<8x2x8xf32>
    %47 = vector.extract_strided_slice %45 {offsets = [0, 0, 0], sizes = [8, 16, 8], strides = [1, 1, 1]} : vector<12x16x8xf32> to vector<8x16x8xf32>
    %48 = vector.extract_strided_slice %47 {offsets = [0, 0, 0], sizes = [8, 14, 8], strides = [1, 1, 1]} : vector<8x16x8xf32> to vector<8x14x8xf32>
    %49 = tpu.concatenate %46, %48 in 1 : vector<8x2x8xf32>, vector<8x14x8xf32> -> vector<8x16x8xf32>
    %50 = vector.extract_strided_slice %47 {offsets = [0, 2, 0], sizes = [8, 14, 8], strides = [1, 1, 1]} : vector<8x16x8xf32> to vector<8x14x8xf32>
    %51 = tpu.concatenate %50, %46 in 1 : vector<8x14x8xf32>, vector<8x2x8xf32> -> vector<8x16x8xf32>
    %c0_18 = arith.constant 0 : index
    %c0_19 = arith.constant 0 : index
    %52 = vector.load %arg4[%c0_18, %c0_19] : memref<9x8xf32, #tpu.memory_space<vmem>>, vector<1x8xf32>
    %53 = vector.shape_cast %52 : vector<1x8xf32> to vector<8xf32>
    %54 = vector.shape_cast %53 : vector<8xf32> to vector<1x1x8xf32>
    %55 = vector.broadcast %54 : vector<1x1x8xf32> to vector<8x16x8xf32>
    %56 = arith.mulf %49, %55 : vector<8x16x8xf32>
    %c1 = arith.constant 1 : index
    %c0_20 = arith.constant 0 : index
    %57 = vector.load %arg5[%c1, %c0_20] : memref<2x8xf32, #tpu.memory_space<vmem>>, vector<1x8xf32>
    %58 = vector.shape_cast %57 : vector<1x8xf32> to vector<8xf32>
    %59 = vector.shape_cast %58 : vector<8xf32> to vector<1x1x8xf32>
    %60 = vector.broadcast %59 : vector<1x1x8xf32> to vector<8x16x8xf32>
    %61 = arith.addf %56, %60 : vector<8x16x8xf32>
    %c1_21 = arith.constant 1 : index
    %c0_22 = arith.constant 0 : index
    %62 = vector.load %arg4[%c1_21, %c0_22] : memref<9x8xf32, #tpu.memory_space<vmem>>, vector<1x8xf32>
    %63 = vector.shape_cast %62 : vector<1x8xf32> to vector<8xf32>
    %64 = vector.shape_cast %63 : vector<8xf32> to vector<1x1x8xf32>
    %65 = vector.broadcast %64 : vector<1x1x8xf32> to vector<8x16x8xf32>
    %66 = arith.mulf %47, %65 : vector<8x16x8xf32>
    %67 = arith.addf %61, %66 : vector<8x16x8xf32>
    %c2 = arith.constant 2 : index
    %c0_23 = arith.constant 0 : index
    %68 = vector.load %arg4[%c2, %c0_23] : memref<9x8xf32, #tpu.memory_space<vmem>>, vector<1x8xf32>
    %69 = vector.shape_cast %68 : vector<1x8xf32> to vector<8xf32>
    %70 = vector.shape_cast %69 : vector<8xf32> to vector<1x1x8xf32>
    %71 = vector.broadcast %70 : vector<1x1x8xf32> to vector<8x16x8xf32>
    %72 = arith.mulf %51, %71 : vector<8x16x8xf32>
    %73 = arith.addf %67, %72 : vector<8x16x8xf32>
    %74 = vector.extract_strided_slice %45 {offsets = [2, 0, 0], sizes = [8, 16, 8], strides = [1, 1, 1]} : vector<12x16x8xf32> to vector<8x16x8xf32>
    %75 = vector.extract_strided_slice %74 {offsets = [0, 0, 0], sizes = [8, 14, 8], strides = [1, 1, 1]} : vector<8x16x8xf32> to vector<8x14x8xf32>
    %76 = tpu.concatenate %46, %75 in 1 : vector<8x2x8xf32>, vector<8x14x8xf32> -> vector<8x16x8xf32>
    %77 = vector.extract_strided_slice %74 {offsets = [0, 2, 0], sizes = [8, 14, 8], strides = [1, 1, 1]} : vector<8x16x8xf32> to vector<8x14x8xf32>
    %78 = tpu.concatenate %77, %46 in 1 : vector<8x14x8xf32>, vector<8x2x8xf32> -> vector<8x16x8xf32>
    %c3 = arith.constant 3 : index
    %c0_24 = arith.constant 0 : index
    %79 = vector.load %arg4[%c3, %c0_24] : memref<9x8xf32, #tpu.memory_space<vmem>>, vector<1x8xf32>
    %80 = vector.shape_cast %79 : vector<1x8xf32> to vector<8xf32>
    %81 = vector.shape_cast %80 : vector<8xf32> to vector<1x1x8xf32>
    %82 = vector.broadcast %81 : vector<1x1x8xf32> to vector<8x16x8xf32>
    %83 = arith.mulf %76, %82 : vector<8x16x8xf32>
    %84 = arith.addf %73, %83 : vector<8x16x8xf32>
    %c4 = arith.constant 4 : index
    %c0_25 = arith.constant 0 : index
    %85 = vector.load %arg4[%c4, %c0_25] : memref<9x8xf32, #tpu.memory_space<vmem>>, vector<1x8xf32>
    %86 = vector.shape_cast %85 : vector<1x8xf32> to vector<8xf32>
    %87 = vector.shape_cast %86 : vector<8xf32> to vector<1x1x8xf32>
    %88 = vector.broadcast %87 : vector<1x1x8xf32> to vector<8x16x8xf32>
    %89 = arith.mulf %74, %88 : vector<8x16x8xf32>
    %90 = arith.addf %84, %89 : vector<8x16x8xf32>
    %c5 = arith.constant 5 : index
    %c0_26 = arith.constant 0 : index
    %91 = vector.load %arg4[%c5, %c0_26] : memref<9x8xf32, #tpu.memory_space<vmem>>, vector<1x8xf32>
    %92 = vector.shape_cast %91 : vector<1x8xf32> to vector<8xf32>
    %93 = vector.shape_cast %92 : vector<8xf32> to vector<1x1x8xf32>
    %94 = vector.broadcast %93 : vector<1x1x8xf32> to vector<8x16x8xf32>
    %95 = arith.mulf %78, %94 : vector<8x16x8xf32>
    %96 = arith.addf %90, %95 : vector<8x16x8xf32>
    %97 = vector.extract_strided_slice %45 {offsets = [4, 0, 0], sizes = [8, 16, 8], strides = [1, 1, 1]} : vector<12x16x8xf32> to vector<8x16x8xf32>
    %98 = vector.extract_strided_slice %97 {offsets = [0, 0, 0], sizes = [8, 14, 8], strides = [1, 1, 1]} : vector<8x16x8xf32> to vector<8x14x8xf32>
    %99 = tpu.concatenate %46, %98 in 1 : vector<8x2x8xf32>, vector<8x14x8xf32> -> vector<8x16x8xf32>
    %100 = vector.extract_strided_slice %97 {offsets = [0, 2, 0], sizes = [8, 14, 8], strides = [1, 1, 1]} : vector<8x16x8xf32> to vector<8x14x8xf32>
    %101 = tpu.concatenate %100, %46 in 1 : vector<8x14x8xf32>, vector<8x2x8xf32> -> vector<8x16x8xf32>
    %c6 = arith.constant 6 : index
    %c0_27 = arith.constant 0 : index
    %102 = vector.load %arg4[%c6, %c0_27] : memref<9x8xf32, #tpu.memory_space<vmem>>, vector<1x8xf32>
    %103 = vector.shape_cast %102 : vector<1x8xf32> to vector<8xf32>
    %104 = vector.shape_cast %103 : vector<8xf32> to vector<1x1x8xf32>
    %105 = vector.broadcast %104 : vector<1x1x8xf32> to vector<8x16x8xf32>
    %106 = arith.mulf %99, %105 : vector<8x16x8xf32>
    %107 = arith.addf %96, %106 : vector<8x16x8xf32>
    %c7 = arith.constant 7 : index
    %c0_28 = arith.constant 0 : index
    %108 = vector.load %arg4[%c7, %c0_28] : memref<9x8xf32, #tpu.memory_space<vmem>>, vector<1x8xf32>
    %109 = vector.shape_cast %108 : vector<1x8xf32> to vector<8xf32>
    %110 = vector.shape_cast %109 : vector<8xf32> to vector<1x1x8xf32>
    %111 = vector.broadcast %110 : vector<1x1x8xf32> to vector<8x16x8xf32>
    %112 = arith.mulf %97, %111 : vector<8x16x8xf32>
    %113 = arith.addf %107, %112 : vector<8x16x8xf32>
    %c8 = arith.constant 8 : index
    %c0_29 = arith.constant 0 : index
    %114 = vector.load %arg4[%c8, %c0_29] : memref<9x8xf32, #tpu.memory_space<vmem>>, vector<1x8xf32>
    %115 = vector.shape_cast %114 : vector<1x8xf32> to vector<8xf32>
    %116 = vector.shape_cast %115 : vector<8xf32> to vector<1x1x8xf32>
    %117 = vector.broadcast %116 : vector<1x1x8xf32> to vector<8x16x8xf32>
    %118 = arith.mulf %101, %117 : vector<8x16x8xf32>
    %119 = arith.addf %113, %118 : vector<8x16x8xf32>
    %120 = vector.extract_strided_slice %119 {offsets = [0, 0, 0], sizes = [8, 16, 4], strides = [1, 1, 1]} : vector<8x16x8xf32> to vector<8x16x4xf32>
    %121 = vector.extract_strided_slice %119 {offsets = [0, 0, 4], sizes = [8, 16, 4], strides = [1, 1, 1]} : vector<8x16x8xf32> to vector<8x16x4xf32>
    %122 = arith.mulf %120, %121 : vector<8x16x4xf32>
    %c0_30 = arith.constant 0 : index
    %c0_31 = arith.constant 0 : index
    %c0_32 = arith.constant 0 : index
    %c0_33 = arith.constant 0 : index
    %123 = vector.load %arg6[%c0_30, %c0_31, %c0_32, %c0_33] : memref<1x8x16x4xf32, #tpu.memory_space<vmem>>, vector<1x8x16x4xf32>
    %124 = vector.shape_cast %123 : vector<1x8x16x4xf32> to vector<8x16x4xf32>
    %125 = vector.shape_cast %122 : vector<8x16x4xf32> to vector<1x8x16x4xf32>
    tpu.vector_store %arg6[%c0_30, %c0_31, %c0_32, %c0_33], %125 {strides = array<i32>} : memref<1x8x16x4xf32, #tpu.memory_space<vmem>>, vector<1x8x16x4xf32>,
    %126 = vector.shape_cast %122 : vector<8x16x4xf32> to vector<128x4xf32>
    %cst_34 = arith.constant dense<0.000000e+00> : vector<4xf32>
    %127 = vector.multi_reduction <add>, %126, %cst_34 [0] : vector<128x4xf32> to vector<4xf32>
    %128 = vector.shape_cast %127 : vector<4xf32> to vector<1x1x1x4xf32>
    %c0_35 = arith.constant 0 : index
    %c0_36 = arith.constant 0 : index
    %c0_37 = arith.constant 0 : index
    %c0_38 = arith.constant 0 : index
    %129 = vector.load %arg7[%c0_35, %c0_36, %c0_37, %c0_38] : memref<1x1x1x4xf32, #tpu.memory_space<vmem>>, vector<1x1x1x4xf32>
    tpu.vector_store %arg7[%c0_35, %c0_36, %c0_37, %c0_38], %128 {strides = array<i32>} : memref<1x1x1x4xf32, #tpu.memory_space<vmem>>, vector<1x1x1x4xf32>,
    return
  }
  func.func @transform_0(%arg0: i32, %arg1: i32) -> (i32, i32, i32, i32, i32) {
    %c0_i32 = arith.constant 0 : i32
    %c0_i32_0 = arith.constant 0 : i32
    %c0_i32_1 = arith.constant 0 : i32
    %c0_i32_2 = arith.constant 0 : i32
    return %arg0, %arg1, %c0_i32, %c0_i32_0, %c0_i32_1 : i32, i32, i32, i32, i32
  }
  func.func @transform_1(%arg0: i32, %arg1: i32) -> (i32, i32) {
    %c0_i32 = arith.constant 0 : i32
    %c0_i32_0 = arith.constant 0 : i32
    %c0_i32_1 = arith.constant 0 : i32
    return %c0_i32, %c0_i32_0 : i32, i32
  }
  func.func @transform_2(%arg0: i32, %arg1: i32) -> (i32, i32) {
    %c0_i32 = arith.constant 0 : i32
    %c0_i32_0 = arith.constant 0 : i32
    %c0_i32_1 = arith.constant 0 : i32
    return %c0_i32, %c0_i32_0 : i32, i32
  }
  func.func @transform_3(%arg0: i32, %arg1: i32) -> (i32, i32) {
    %c0_i32 = arith.constant 0 : i32
    %c0_i32_0 = arith.constant 0 : i32
    %c0_i32_1 = arith.constant 0 : i32
    return %c0_i32, %c0_i32_0 : i32, i32
  }
  func.func @transform_4(%arg0: i32, %arg1: i32) -> (i32, i32, i32, i32) {
    %c0_i32 = arith.constant 0 : i32
    %c0_i32_0 = arith.constant 0 : i32
    %c0_i32_1 = arith.constant 0 : i32
    return %arg0, %arg1, %c0_i32, %c0_i32_0 : i32, i32, i32, i32
  }
  func.func @transform_5(%arg0: i32, %arg1: i32) -> (i32, i32, i32, i32) {
    %c0_i32 = arith.constant 0 : i32
    %c0_i32_0 = arith.constant 0 : i32
    %c0_i32_1 = arith.constant 0 : i32
    return %arg0, %arg1, %c0_i32, %c0_i32_0 : i32, i32, i32, i32
  }
}

</mosaic_0001>

<llo_original>
// kernel: tpu_custom_call.1
$region0: #{tpu_custom_call.1}
  #allocation0 [shape = 'u32[]', space=smem, size = 0x4, offset = 0x4, fixed_abs, tag = 'smem constant byte address 0x4 - core index']
  #allocation1 [shape = 'u32[72,128]{1,0:T(1,128)}', space=vmem, size = 0x9000, scoped, tag = 'internal scratch']
  %s0 = inlined_call_operand.vmem [shape: f32[2,2,12,16,4], index: 0, kind: input, shape index: {}]
  %s1 = inlined_call_operand.vmem [shape: bf16[4,8], index: 1, kind: input, shape index: {}]
  %s2 = inlined_call_operand.vmem [shape: f32[9,8], index: 2, kind: input, shape index: {}]
  %s3 = inlined_call_operand.vmem [shape: f32[2,8], index: 3, kind: input, shape index: {}]
  %s4 = inlined_call_operand.vmem [shape: f32[2,16,16,4], index: 4, kind: output, shape index: {0}]
  %s5 = inlined_call_operand.hbm [shape: f32[2,2,1,4], index: 5, kind: output, shape index: {1}]
  %6 = xla_tuple %s4, %s5
  %s7 = sld [smem:[#allocation0]]
  $region57: #{tpu_custom_call.1} parent=0
    _
  %s9 = ssub.s32 1, %s7
  %s10 = scalar_select 0, %s9, %s7
  $region1: #{tpu_custom_call.1} parent=0
    #allocation2 [shape = 'u8[1024]{0}', space=vmem, size = 0x400, scoped, tag = 'output window, operand 1']
    #allocation3 [shape = 's32[2]{0}', space=sflag, size = 0x8, scoped, tag = 'scoped memory for tpu_custom_call.1']
    %11 = vsyncpa [#allocation3], 0
    %s12 = scalar_lea.sflag [#allocation3], 1
    %13 = vsyncpa %s12, 0
    loop: start=0, step=1, limit=6
    $region2: #{tpu_custom_call.1} parent=1 // loop_pre_header
      _
    $region3: #{tpu_custom_call.1} parent=1 // loop_header
      %s15 = sphi 0, %s19
      %p16 = scmp.ge.s32.totalorder %s15, 6
      %s22 = sphi 0, %s34
      %s23 = sphi 0, %s30
      %s24 = sphi 0, %s22
      %s25 = sphi 0, %s23
      %s26 = sphi 0, %s24
      %s27 = sphi 0, %s25
      %s39 = sphi 0, %s41
      %s42 = sphi 0, %s39
      %s43 = sphi 0, %s42
      %s59 = sphi 0, %s43
      %s63 = sphi 0, %s63
      %s65 = sphi 0, %s63
      %s66 = sphi 0, %s65
      %s80 = sphi 0, %s66
      %s84 = sphi 0, %s84
      %s86 = sphi 0, %s84
      %s87 = sphi 0, %s86
      %s101 = sphi 0, %s87
      %s105 = sphi 0, %s105
      %s107 = sphi 0, %s105
      %s108 = sphi 0, %s107
      %s122 = sphi 0, %s108
      %s130 = sphi 0, %s132
      %s133 = sphi 0, %s130
      %s134 = sphi 0, %s133
      %s150 = sphi 0, %s134
      %s158 = sphi 0, %s160
      %s161 = sphi 0, %s158
      %s162 = sphi 0, %s161
      %s178 = sphi 0, %s162
    $region4: #{tpu_custom_call.1} parent=1 // loop_header_branch
      %18 = sbr.rel (%p16) target = $region8
    $region5: #{tpu_custom_call.1} parent=1 // loop_body
      %s20 = ssub.s32 %s15, 1
      %s21 = ssub.s32 %s15, 2
      %s28 = sadd.s32 1, %s23
      %p29 = scmp.ge.s32.totalorder %s28, 2
      %s30 = scalar_select %p29, 0, %s28
      %s31 = sadd.s32 1, %s22
      %s32 = scalar_select %p29, %s31, %s22
      %p33 = scmp.ge.s32.totalorder %s32, 2
      %s34 = scalar_select %p33, 0, %s32
      %s35 = ssub.s32 %s22, %s34
      %s36 = ssub.s32 %s23, %s30
      %s37 = sor.u32 %s35, %s36
      %p38 = scmp.eq.s32.totalorder %s37, 0
      %s40 = sadd.s32 %s39, 1
      %s41 = scalar_select %p38, %s39, %s40
      %p44 = pneg %p38
      %p45 = scmp.eq.s32.totalorder %s15, 3
      %p46 = por %p44, %p45
      %p47 = scmp.ne.s32.totalorder %s39, %s42
      %p48 = scmp.eq.s32.totalorder %s15, 0
      %p49 = por %p47, %p48
      %p50 = scmp.ne.s32.totalorder %s39, %s42
      %p51 = scmp.eq.s32.totalorder %s20, 3
      %p52 = por %p50, %p51
      %p53 = scmp.ne.s32.totalorder %s42, %s43
      %p54 = scmp.eq.s32.totalorder %s20, 0
      %p55 = por %p53, %p54
      %p56 = scmp.ne.s32.totalorder %s42, %s43
      %p57 = scmp.eq.s32.totalorder %s21, 3
      %p58 = por %p56, %p57
      %p60 = scmp.ne.s32.totalorder %s43, %s59
      %p61 = scmp.eq.s32.totalorder %s21, 0
      %p62 = por %p60, %p61
      %s64 = sadd.s32 %s63, 1
      %p67 = scmp.eq.s32.totalorder %s15, 3
      %p68 = scmp.ne.s32.totalorder %s63, %s65
      %p69 = scmp.eq.s32.totalorder %s15, 0
      %p70 = por %p68, %p69
      %p71 = scmp.ne.s32.totalorder %s63, %s65
      %p72 = scmp.eq.s32.totalorder %s20, 3
      %p73 = por %p71, %p72
      %p74 = scmp.ne.s32.totalorder %s65, %s66
      %p75 = scmp.eq.s32.totalorder %s20, 0
      %p76 = por %p74, %p75
      %p77 = scmp.ne.s32.totalorder %s65, %s66
      %p78 = scmp.eq.s32.totalorder %s21, 3
      %p79 = por %p77, %p78
      %p81 = scmp.ne.s32.totalorder %s66, %s80
      %p82 = scmp.eq.s32.totalorder %s21, 0
      %p83 = por %p81, %p82
      %s85 = sadd.s32 %s84, 1
      %p88 = scmp.eq.s32.totalorder %s15, 3
      %p89 = scmp.ne.s32.totalorder %s84, %s86
      %p90 = scmp.eq.s32.totalorder %s15, 0
      %p91 = por %p89, %p90
      %p92 = scmp.ne.s32.totalorder %s84, %s86
      %p93 = scmp.eq.s32.totalorder %s20, 3
      %p94 = por %p92, %p93
      %p95 = scmp.ne.s32.totalorder %s86, %s87
      %p96 = scmp.eq.s32.totalorder %s20, 0
      %p97 = por %p95, %p96
      %p98 = scmp.ne.s32.totalorder %s86, %s87
      %p99 = scmp.eq.s32.totalorder %s21, 3
      %p100 = por %p98, %p99
      %p102 = scmp.ne.s32.totalorder %s87, %s101
      %p103 = scmp.eq.s32.totalorder %s21, 0
      %p104 = por %p102, %p103
      %s106 = sadd.s32 %s105, 1
      %p109 = scmp.eq.s32.totalorder %s15, 3
      %p110 = scmp.ne.s32.totalorder %s105, %s107
      %p111 = scmp.eq.s32.totalorder %s15, 0
      %p112 = por %p110, %p111
      %p113 = scmp.ne.s32.totalorder %s105, %s107
      %p114 = scmp.eq.s32.totalorder %s20, 3
      %p115 = por %p113, %p114
      %p116 = scmp.ne.s32.totalorder %s107, %s108
      %p117 = scmp.eq.s32.totalorder %s20, 0
      %p118 = por %p116, %p117
      %p119 = scmp.ne.s32.totalorder %s107, %s108
      %p120 = scmp.eq.s32.totalorder %s21, 3
      %p121 = por %p119, %p120
      %p123 = scmp.ne.s32.totalorder %s108, %s122
      %p124 = scmp.eq.s32.totalorder %s21, 0
      %p125 = por %p123, %p124
      %s126 = ssub.s32 %s22, %s34
      %s127 = ssub.s32 %s23, %s30
      %s128 = sor.u32 %s126, %s127
      %p129 = scmp.eq.s32.totalorder %s128, 0
      %s131 = sadd.s32 %s130, 1
      %s132 = scalar_select %p129, %s130, %s131
      %p135 = pneg %p129
      %p136 = scmp.eq.s32.totalorder %s15, 3
      %p137 = por %p135, %p136
      %p138 = scmp.ne.s32.totalorder %s130, %s133
      %p139 = scmp.eq.s32.totalorder %s15, 0
      %p140 = por %p138, %p139
      %p141 = scmp.ne.s32.totalorder %s130, %s133
      %p142 = scmp.eq.s32.totalorder %s20, 3
      %p143 = por %p141, %p142
      %p144 = scmp.ne.s32.totalorder %s133, %s134
      %p145 = scmp.eq.s32.totalorder %s20, 0
      %p146 = por %p144, %p145
      %p147 = scmp.ne.s32.totalorder %s133, %s134
      %p148 = scmp.eq.s32.totalorder %s21, 3
      %p149 = por %p147, %p148
      %p151 = scmp.ne.s32.totalorder %s134, %s150
      %p152 = scmp.eq.s32.totalorder %s21, 0
      %p153 = por %p151, %p152
      %s154 = ssub.s32 %s22, %s34
      %s155 = ssub.s32 %s23, %s30
      %s156 = sor.u32 %s154, %s155
      %p157 = scmp.eq.s32.totalorder %s156, 0
      %s159 = sadd.s32 %s158, 1
      %s160 = scalar_select %p157, %s158, %s159
      %p163 = pneg %p157
      %p164 = scmp.eq.s32.totalorder %s15, 3
      %p165 = por %p163, %p164
      %p166 = scmp.ne.s32.totalorder %s158, %s161
      %p167 = scmp.eq.s32.totalorder %s15, 0
      %p168 = por %p166, %p167
      %p169 = scmp.ne.s32.totalorder %s158, %s161
      %p170 = scmp.eq.s32.totalorder %s20, 3
      %p171 = por %p169, %p170
      %p172 = scmp.ne.s32.totalorder %s161, %s162
      %p173 = scmp.eq.s32.totalorder %s20, 0
      %p174 = por %p172, %p173
      %p175 = scmp.ne.s32.totalorder %s161, %s162
      %p176 = scmp.eq.s32.totalorder %s21, 3
      %p177 = por %p175, %p176
      %p179 = scmp.ne.s32.totalorder %s162, %s178
      %p180 = scmp.eq.s32.totalorder %s21, 0
      %p181 = por %p179, %p180
      %p182 = scmp.le.s32.totalorder 1, %s15
      %p183 = scmp.lt.s32.totalorder %s15, 5
      %p184 = pnand %p182, %p183
      %p185 = pneg %p184
      // Predicated region
      $region9: #{tpu_custom_call.1} parent=5 // pred_check
        _
      $region10: #{tpu_custom_call.1} parent=5 // pred_check_branch
        %187 = sbr.rel (%p184) target = $region12
      $region11: #{tpu_custom_call.1} parent=5 // pred_region
        %s188 = ssub.s32 %s15, 1
        // Predicated region
        $region13: #{tpu_custom_call.1} parent=11 // pred_check
          %p189 = pneg %p76
        $region14: #{tpu_custom_call.1} parent=11 // pred_check_branch
          %191 = sbr.rel (%p189) target = $region16
        $region15: #{tpu_custom_call.1} parent=11 // pred_region
          _
        $region16: #{tpu_custom_call.1} parent=11 // pred_fallthru
          _
        // Predicated region
        $region17: #{tpu_custom_call.1} parent=11 // pred_check
          %p192 = pneg %p97
        $region18: #{tpu_custom_call.1} parent=11 // pred_check_branch
          %194 = sbr.rel (%p192) target = $region20
        $region19: #{tpu_custom_call.1} parent=11 // pred_region
          _
        $region20: #{tpu_custom_call.1} parent=11 // pred_fallthru
          _
        // Predicated region
        $region21: #{tpu_custom_call.1} parent=11 // pred_check
          %p195 = pneg %p118
        $region22: #{tpu_custom_call.1} parent=11 // pred_check_branch
          %197 = sbr.rel (%p195) target = $region24
        $region23: #{tpu_custom_call.1} parent=11 // pred_region
          _
        $region24: #{tpu_custom_call.1} parent=11 // pred_fallthru
          _
      $region12: #{tpu_custom_call.1} parent=5 // pred_fallthru
        _
      %p198 = scmp.lt.s32.totalorder %s15, 4
      // Predicated region
      $region25: #{tpu_custom_call.1} parent=5 // pred_check
        %p199 = pneg %p198
      $region26: #{tpu_custom_call.1} parent=5 // pred_check_branch
        %201 = sbr.rel (%p199) target = $region28
      $region27: #{tpu_custom_call.1} parent=5 // pred_region
        // Predicated region
        $region29: #{tpu_custom_call.1} parent=27 // pred_check
          %p202 = pneg %p49
        $region30: #{tpu_custom_call.1} parent=27 // pred_check_branch
          %204 = sbr.rel (%p202) target = $region32
        $region31: #{tpu_custom_call.1} parent=27 // pred_region
          %p205 = scmp.lt.s32.totalorder %s22, 1
          %s206 = scalar_select %p205, %s22, 1
          %p207 = scmp.lt.s32.totalorder %s23, 1
          %s208 = scalar_select %p207, %s23, 1
          %s209 = smul.addr %s208, 24
          %s210 = smul.addr %s206, 48
          %s211 = sadd.s32 %s209, %s210
          %s212 = smul.addr %s211, 8
          %s213 = scalar_lea.vmem %s0, %s212
        $region32: #{tpu_custom_call.1} parent=27 // pred_fallthru
          _
      $region28: #{tpu_custom_call.1} parent=5 // pred_fallthru
        _
      %p214 = scmp.le.s32.totalorder 1, %s15
      %p215 = scmp.lt.s32.totalorder %s15, 5
      %p216 = pnand %p214, %p215
      %p217 = pneg %p216
      // Predicated region
      $region33: #{tpu_custom_call.1} parent=5 // pred_check
        _
      $region34: #{tpu_custom_call.1} parent=5 // pred_check_branch
        %219 = sbr.rel (%p216) target = $region36
      $region35: #{tpu_custom_call.1} parent=5 // pred_region
        %s220 = ssub.s32 %s15, 1
        %p221 = scmp.lt.s32.totalorder %s24, 1
        %s222 = scalar_select %p221, %s24, 1
        %p223 = scmp.lt.s32.totalorder %s25, 1
        %s224 = scalar_select %p223, %s25, 1
        %s225 = smul.addr %s224, 24
        %s226 = smul.addr %s222, 48
        %s227 = sadd.s32 %s225, %s226
        %s228 = smul.addr %s227, 8
        %s229 = scalar_lea.vmem %s0, %s228
        %p230 = pneg %p55
        %p231 = pneg %p52
        %p232 = pneg %p76
        %p233 = pneg %p73
        %p234 = pneg %p97
        %p235 = pneg %p94
        %p236 = pneg %p118
        %p237 = pneg %p115
        %p238 = pneg %p146
        %p239 = pneg %p143
        %s240 = smul.u32 8, %s25
        %p241 = scmp.lt.s32.totalorder %s24, 1
        %s242 = scalar_select %p241, %s24, 1
        %p243 = scmp.lt.s32.totalorder %s240, 15
        %s244 = scalar_select %p243, %s240, 15
        %s245 = smul.addr %s244, 2
        %s246 = smul.addr %s242, 32
        %s247 = sadd.s32 %s245, %s246
        %s248 = smul.addr %s247, 8
        %s249 = scalar_lea.vmem %s4, %s248
        %p250 = pneg %p174
        %p251 = pneg %p171
        %s252 = sand.u32 %s161, 1
        %s253 = scalar_lea.sflag [#allocation3], %s252
        %s254 = sand.u32 %s161, 1
        %s255 = scalar_lea.vmem [#allocation2], %s254
        %p256 = scmp.lt.s32.totalorder %s24, 1
        %s257 = scalar_select %p256, %s24, 1
        %p258 = scmp.lt.s32.totalorder %s25, 1
        %s259 = scalar_select %p258, %s25, 1
        %s260 = smul.addr %s259, 24
        %s261 = smul.addr %s257, 48
        %s262 = sadd.s32 %s260, %s261
        %s263 = smul.addr %s262, 8
        %s264 = scalar_lea.vmem %s0, %s263
        %s265 = smul.u32 8, %s25
        %p266 = scmp.lt.s32.totalorder %s24, 1
        %s267 = scalar_select %p266, %s24, 1
        %p268 = scmp.lt.s32.totalorder %s265, 15
        %s269 = scalar_select %p268, %s265, 15
        %s270 = smul.addr %s269, 2
        %s271 = smul.addr %s267, 32
        %s272 = sadd.s32 %s270, %s271
        %s273 = smul.addr %s272, 8
        %s274 = scalar_lea.vmem %s4, %s273
        %s275 = smul.u32 8, %s25
        %v277 = vld [vmem:[%s264] sm:$0xff]
        %v278 = vld [vmem:[%s264 + $0x8] sm:$0xff]
        %v279 = vld [vmem:[%s264 + $0x10] sm:$0xff]
        %v280 = vld [vmem:[%s264 + $0x18] sm:$0xff]
        %v281 = vld [vmem:[%s264 + $0x20] sm:$0xff]
        %v282 = vld [vmem:[%s264 + $0x28] sm:$0xff]
        %v283 = vld [vmem:[%s264 + $0x30] sm:$0xff]
        %v284 = vld [vmem:[%s264 + $0x38] sm:$0xff]
        %v285 = vld [vmem:[%s264 + $0x40] sm:$0xff]
        %v286 = vld [vmem:[%s264 + $0x48] sm:$0xff]
        %v287 = vld [vmem:[%s264 + $0x50] sm:$0xff]
        %v288 = vld [vmem:[%s264 + $0x58] sm:$0xff]
        %v289 = vld [vmem:[%s264 + $0x60] sm:$0xff]
        %v290 = vld [vmem:[%s264 + $0x68] sm:$0xff]
        %v291 = vld [vmem:[%s264 + $0x70] sm:$0xff]
        %v292 = vld [vmem:[%s264 + $0x78] sm:$0xff]
        %v293 = vld [vmem:[%s264 + $0x80] sm:$0xff]
        %v294 = vld [vmem:[%s264 + $0x88] sm:$0xff]
        %v295 = vld [vmem:[%s264 + $0x90] sm:$0xff]
        %v296 = vld [vmem:[%s264 + $0x98] sm:$0xff]
        %v297 = vld [vmem:[%s264 + $0xa0] sm:$0xff]
        %v298 = vld [vmem:[%s264 + $0xa8] sm:$0xff]
        %v299 = vld [vmem:[%s264 + $0xb0] sm:$0xff]
        %v300 = vld [vmem:[%s264 + $0xb8] sm:$0xff]
        %vm301 = vcmask 31744
        %v302 = vsel %vm301, %v277, 0.0
        %303 = vadd.xlane.f32.xlu0 %v302
        %v304 = vpop.xlane.xlu0 %303
        %v305 = vsel %vm301, %v278, 0.0
        %306 = vadd.xlane.f32.xlu0 %v305
        %v307 = vpop.xlane.xlu0 %306
        %v308 = vsel %vm301, %v279, 0.0
        %309 = vadd.xlane.f32.xlu0 %v308
        %v310 = vpop.xlane.xlu0 %309
        %v311 = vsel %vm301, %v280, 0.0
        %312 = vadd.xlane.f32.xlu0 %v311
        %v313 = vpop.xlane.xlu0 %312
        %v314 = vsel %vm301, %v281, 0.0
        %315 = vadd.xlane.f32.xlu0 %v314
        %v316 = vpop.xlane.xlu0 %315
        %v317 = vsel %vm301, %v282, 0.0
        %318 = vadd.xlane.f32.xlu0 %v317
        %v319 = vpop.xlane.xlu0 %318
        %v320 = vsel %vm301, %v283, 0.0
        %321 = vadd.xlane.f32.xlu0 %v320
        %v322 = vpop.xlane.xlu0 %321
        %v323 = vsel %vm301, %v284, 0.0
        %324 = vadd.xlane.f32.xlu0 %v323
        %v325 = vpop.xlane.xlu0 %324
        %v326 = vsel %vm301, %v285, 0.0
        %327 = vadd.xlane.f32.xlu0 %v326
        %v328 = vpop.xlane.xlu0 %327
        %v329 = vsel %vm301, %v286, 0.0
        %330 = vadd.xlane.f32.xlu0 %v329
        %v331 = vpop.xlane.xlu0 %330
        %v332 = vsel %vm301, %v287, 0.0
        %333 = vadd.xlane.f32.xlu0 %v332
        %v334 = vpop.xlane.xlu0 %333
        %v335 = vsel %vm301, %v288, 0.0
        %336 = vadd.xlane.f32.xlu0 %v335
        %v337 = vpop.xlane.xlu0 %336
        %v338 = vsel %vm301, %v289, 0.0
        %339 = vadd.xlane.f32.xlu0 %v338
        %v340 = vpop.xlane.xlu0 %339
        %v341 = vsel %vm301, %v290, 0.0
        %342 = vadd.xlane.f32.xlu0 %v341
        %v343 = vpop.xlane.xlu0 %342
        %v344 = vsel %vm301, %v291, 0.0
        %345 = vadd.xlane.f32.xlu0 %v344
        %v346 = vpop.xlane.xlu0 %345
        %v347 = vsel %vm301, %v292, 0.0
        %348 = vadd.xlane.f32.xlu0 %v347
        %v349 = vpop.xlane.xlu0 %348
        %v350 = vsel %vm301, %v293, 0.0
        %351 = vadd.xlane.f32.xlu0 %v350
        %v352 = vpop.xlane.xlu0 %351
        %v353 = vsel %vm301, %v294, 0.0
        %354 = vadd.xlane.f32.xlu0 %v353
        %v355 = vpop.xlane.xlu0 %354
        %v356 = vsel %vm301, %v295, 0.0
        %357 = vadd.xlane.f32.xlu0 %v356
        %v358 = vpop.xlane.xlu0 %357
        %v359 = vsel %vm301, %v296, 0.0
        %360 = vadd.xlane.f32.xlu0 %v359
        %v361 = vpop.xlane.xlu0 %360
        %v362 = vsel %vm301, %v297, 0.0
        %363 = vadd.xlane.f32.xlu0 %v362
        %v364 = vpop.xlane.xlu0 %363
        %v365 = vsel %vm301, %v298, 0.0
        %366 = vadd.xlane.f32.xlu0 %v365
        %v367 = vpop.xlane.xlu0 %366
        %v368 = vsel %vm301, %v299, 0.0
        %369 = vadd.xlane.f32.xlu0 %v368
        %v370 = vpop.xlane.xlu0 %369
        %v371 = vsel %vm301, %v300, 0.0
        %372 = vadd.xlane.f32.xlu0 %v371
        %v373 = vpop.xlane.xlu0 %372
        %v374 = vrcp.pop 4.0
        %v375 = vmul.f32 4.0, %v374
        %v376 = vsub.f32 1.0, %v375
        %v377 = vmul.f32 %v374, %v376
        %v378 = vadd.f32 %v374, %v377
        %vm379 = vweird.f32 %v374
        %v380 = vsel %vm379, %v374, %v378
        %v381 = vmul.f32 %v304, %v380
        %v382 = vmul.f32 %v307, %v380
        %v383 = vmul.f32 %v310, %v380
        %v384 = vmul.f32 %v313, %v380
        %v385 = vmul.f32 %v316, %v380
        %v386 = vmul.f32 %v319, %v380
        %v387 = vmul.f32 %v322, %v380
        %v388 = vmul.f32 %v325, %v380
        %v389 = vmul.f32 %v328, %v380
        %v390 = vmul.f32 %v331, %v380
        %v391 = vmul.f32 %v334, %v380
        %v392 = vmul.f32 %v337, %v380
        %v393 = vmul.f32 %v340, %v380
        %v394 = vmul.f32 %v343, %v380
        %v395 = vmul.f32 %v346, %v380
        %v396 = vmul.f32 %v349, %v380
        %v397 = vmul.f32 %v352, %v380
        %v398 = vmul.f32 %v355, %v380
        %v399 = vmul.f32 %v358, %v380
        %v400 = vmul.f32 %v361, %v380
        %v401 = vmul.f32 %v364, %v380
        %v402 = vmul.f32 %v367, %v380
        %v403 = vmul.f32 %v370, %v380
        %v404 = vmul.f32 %v373, %v380
        %v405 = vmul.f32 %v277, %v277
        %v406 = vmul.f32 %v278, %v278
        %v407 = vmul.f32 %v279, %v279
        %v408 = vmul.f32 %v280, %v280
        %v409 = vmul.f32 %v281, %v281
        %v410 = vmul.f32 %v282, %v282
        %v411 = vmul.f32 %v283, %v283
        %v412 = vmul.f32 %v284, %v284
        %v413 = vmul.f32 %v285, %v285
        %v414 = vmul.f32 %v286, %v286
        %v415 = vmul.f32 %v287, %v287
        %v416 = vmul.f32 %v288, %v288
        %v417 = vmul.f32 %v289, %v289
        %v418 = vmul.f32 %v290, %v290
        %v419 = vmul.f32 %v291, %v291
        %v420 = vmul.f32 %v292, %v292
        %v421 = vmul.f32 %v293, %v293
        %v422 = vmul.f32 %v294, %v294
        %v423 = vmul.f32 %v295, %v295
        %v424 = vmul.f32 %v296, %v296
        %v425 = vmul.f32 %v297, %v297
        %v426 = vmul.f32 %v298, %v298
        %v427 = vmul.f32 %v299, %v299
        %v428 = vmul.f32 %v300, %v300
        %v429 = vsel %vm301, %v405, 0.0
        %430 = vadd.xlane.f32.xlu0 %v429
        %v431 = vpop.xlane.xlu0 %430
        %v432 = vsel %vm301, %v406, 0.0
        %433 = vadd.xlane.f32.xlu0 %v432
        %v434 = vpop.xlane.xlu0 %433
        %v435 = vsel %vm301, %v407, 0.0
        %436 = vadd.xlane.f32.xlu0 %v435
        %v437 = vpop.xlane.xlu0 %436
        %v438 = vsel %vm301, %v408, 0.0
        %439 = vadd.xlane.f32.xlu0 %v438
        %v440 = vpop.xlane.xlu0 %439
        %v441 = vsel %vm301, %v409, 0.0
        %442 = vadd.xlane.f32.xlu0 %v441
        %v443 = vpop.xlane.xlu0 %442
        %v444 = vsel %vm301, %v410, 0.0
        %445 = vadd.xlane.f32.xlu0 %v444
        %v446 = vpop.xlane.xlu0 %445
        %v447 = vsel %vm301, %v411, 0.0
        %448 = vadd.xlane.f32.xlu0 %v447
        %v449 = vpop.xlane.xlu0 %448
        %v450 = vsel %vm301, %v412, 0.0
        %451 = vadd.xlane.f32.xlu0 %v450
        %v452 = vpop.xlane.xlu0 %451
        %v453 = vsel %vm301, %v413, 0.0
        %454 = vadd.xlane.f32.xlu0 %v453
        %v455 = vpop.xlane.xlu0 %454
        %v456 = vsel %vm301, %v414, 0.0
        %457 = vadd.xlane.f32.xlu0 %v456
        %v458 = vpop.xlane.xlu0 %457
        %v459 = vsel %vm301, %v415, 0.0
        %460 = vadd.xlane.f32.xlu0 %v459
        %v461 = vpop.xlane.xlu0 %460
        %v462 = vsel %vm301, %v416, 0.0
        %463 = vadd.xlane.f32.xlu0 %v462
        %v464 = vpop.xlane.xlu0 %463
        %v465 = vsel %vm301, %v417, 0.0
        %466 = vadd.xlane.f32.xlu0 %v465
        %v467 = vpop.xlane.xlu0 %466
        %v468 = vsel %vm301, %v418, 0.0
        %469 = vadd.xlane.f32.xlu0 %v468
        %v470 = vpop.xlane.xlu0 %469
        %v471 = vsel %vm301, %v419, 0.0
        %472 = vadd.xlane.f32.xlu0 %v471
        %v473 = vpop.xlane.xlu0 %472
        %v474 = vsel %vm301, %v420, 0.0
        %475 = vadd.xlane.f32.xlu0 %v474
        %v476 = vpop.xlane.xlu0 %475
        %v477 = vsel %vm301, %v421, 0.0
        %478 = vadd.xlane.f32.xlu0 %v477
        %v479 = vpop.xlane.xlu0 %478
        %v480 = vsel %vm301, %v422, 0.0
        %481 = vadd.xlane.f32.xlu0 %v480
        %v482 = vpop.xlane.xlu0 %481
        %v483 = vsel %vm301, %v423, 0.0
        %484 = vadd.xlane.f32.xlu0 %v483
        %v485 = vpop.xlane.xlu0 %484
        %v486 = vsel %vm301, %v424, 0.0
        %487 = vadd.xlane.f32.xlu0 %v486
        %v488 = vpop.xlane.xlu0 %487
        %v489 = vsel %vm301, %v425, 0.0
        %490 = vadd.xlane.f32.xlu0 %v489
        %v491 = vpop.xlane.xlu0 %490
        %v492 = vsel %vm301, %v426, 0.0
        %493 = vadd.xlane.f32.xlu0 %v492
        %v494 = vpop.xlane.xlu0 %493
        %v495 = vsel %vm301, %v427, 0.0
        %496 = vadd.xlane.f32.xlu0 %v495
        %v497 = vpop.xlane.xlu0 %496
        %v498 = vsel %vm301, %v428, 0.0
        %499 = vadd.xlane.f32.xlu0 %v498
        %v500 = vpop.xlane.xlu0 %499
        %v501 = vmul.f32 %v431, %v380
        %v502 = vmul.f32 %v434, %v380
        %v503 = vmul.f32 %v437, %v380
        %v504 = vmul.f32 %v440, %v380
        %v505 = vmul.f32 %v443, %v380
        %v506 = vmul.f32 %v446, %v380
        %v507 = vmul.f32 %v449, %v380
        %v508 = vmul.f32 %v452, %v380
        %v509 = vmul.f32 %v455, %v380
        %v510 = vmul.f32 %v458, %v380
        %v511 = vmul.f32 %v461, %v380
        %v512 = vmul.f32 %v464, %v380
        %v513 = vmul.f32 %v467, %v380
        %v514 = vmul.f32 %v470, %v380
        %v515 = vmul.f32 %v473, %v380
        %v516 = vmul.f32 %v476, %v380
        %v517 = vmul.f32 %v479, %v380
        %v518 = vmul.f32 %v482, %v380
        %v519 = vmul.f32 %v485, %v380
        %v520 = vmul.f32 %v488, %v380
        %v521 = vmul.f32 %v491, %v380
        %v522 = vmul.f32 %v494, %v380
        %v523 = vmul.f32 %v497, %v380
        %v524 = vmul.f32 %v500, %v380
        %v525 = vmul.f32 %v381, %v381
        %v526 = vmul.f32 %v382, %v382
        %v527 = vmul.f32 %v383, %v383
        %v528 = vmul.f32 %v384, %v384
        %v529 = vmul.f32 %v385, %v385
        %v530 = vmul.f32 %v386, %v386
        %v531 = vmul.f32 %v387, %v387
        %v532 = vmul.f32 %v388, %v388
        %v533 = vmul.f32 %v389, %v389
        %v534 = vmul.f32 %v390, %v390
        %v535 = vmul.f32 %v391, %v391
        %v536 = vmul.f32 %v392, %v392
        %v537 = vmul.f32 %v393, %v393
        %v538 = vmul.f32 %v394, %v394
        %v539 = vmul.f32 %v395, %v395
        %v540 = vmul.f32 %v396, %v396
        %v541 = vmul.f32 %v397, %v397
        %v542 = vmul.f32 %v398, %v398
        %v543 = vmul.f32 %v399, %v399
        %v544 = vmul.f32 %v400, %v400
        %v545 = vmul.f32 %v401, %v401
        %v546 = vmul.f32 %v402, %v402
        %v547 = vmul.f32 %v403, %v403
        %v548 = vmul.f32 %v404, %v404
        %v549 = vsub.f32 %v501, %v525
        %v550 = vsub.f32 %v502, %v526
        %v551 = vsub.f32 %v503, %v527
        %v552 = vsub.f32 %v504, %v528
        %v553 = vsub.f32 %v505, %v529
        %v554 = vsub.f32 %v506, %v530
        %v555 = vsub.f32 %v507, %v531
        %v556 = vsub.f32 %v508, %v532
        %v557 = vsub.f32 %v509, %v533
        %v558 = vsub.f32 %v510, %v534
        %v559 = vsub.f32 %v511, %v535
        %v560 = vsub.f32 %v512, %v536
        %v561 = vsub.f32 %v513, %v537
        %v562 = vsub.f32 %v514, %v538
        %v563 = vsub.f32 %v515, %v539
        %v564 = vsub.f32 %v516, %v540
        %v565 = vsub.f32 %v517, %v541
        %v566 = vsub.f32 %v518, %v542
        %v567 = vsub.f32 %v519, %v543
        %v568 = vsub.f32 %v520, %v544
        %v569 = vsub.f32 %v521, %v545
        %v570 = vsub.f32 %v522, %v546
        %v571 = vsub.f32 %v523, %v547
        %v572 = vsub.f32 %v524, %v548
        %v573 = vmax.f32 %v549, 0.0
        %v574 = vmax.f32 %v550, 0.0
        %v575 = vmax.f32 %v551, 0.0
        %v576 = vmax.f32 %v552, 0.0
        %v577 = vmax.f32 %v553, 0.0
        %v578 = vmax.f32 %v554, 0.0
        %v579 = vmax.f32 %v555, 0.0
        %v580 = vmax.f32 %v556, 0.0
        %v581 = vmax.f32 %v557, 0.0
        %v582 = vmax.f32 %v558, 0.0
        %v583 = vmax.f32 %v559, 0.0
        %v584 = vmax.f32 %v560, 0.0
        %v585 = vmax.f32 %v561, 0.0
        %v586 = vmax.f32 %v562, 0.0
        %v587 = vmax.f32 %v563, 0.0
        %v588 = vmax.f32 %v564, 0.0
        %v589 = vmax.f32 %v565, 0.0
        %v590 = vmax.f32 %v566, 0.0
        %v591 = vmax.f32 %v567, 0.0
        %v592 = vmax.f32 %v568, 0.0
        %v593 = vmax.f32 %v569, 0.0
        %v594 = vmax.f32 %v570, 0.0
        %v595 = vmax.f32 %v571, 0.0
        %v596 = vmax.f32 %v572, 0.0
        %v597 = vsub.f32 %v277, %v381
        %v598 = vsub.f32 %v278, %v382
        %v599 = vsub.f32 %v279, %v383
        %v600 = vsub.f32 %v280, %v384
        %v601 = vsub.f32 %v281, %v385
        %v602 = vsub.f32 %v282, %v386
        %v603 = vsub.f32 %v283, %v387
        %v604 = vsub.f32 %v284, %v388
        %v605 = vsub.f32 %v285, %v389
        %v606 = vsub.f32 %v286, %v390
        %v607 = vsub.f32 %v287, %v391
        %v608 = vsub.f32 %v288, %v392
        %v609 = vsub.f32 %v289, %v393
        %v610 = vsub.f32 %v290, %v394
        %v611 = vsub.f32 %v291, %v395
        %v612 = vsub.f32 %v292, %v396
        %v613 = vsub.f32 %v293, %v397
        %v614 = vsub.f32 %v294, %v398
        %v615 = vsub.f32 %v295, %v399
        %v616 = vsub.f32 %v296, %v400
        %v617 = vsub.f32 %v297, %v401
        %v618 = vsub.f32 %v298, %v402
        %v619 = vsub.f32 %v299, %v403
        %v620 = vsub.f32 %v300, %v404
        %v621 = vadd.f32 %v573, 1e-06
        %v622 = vadd.f32 %v574, 1e-06
        %v623 = vadd.f32 %v575, 1e-06
        %v624 = vadd.f32 %v576, 1e-06
        %v625 = vadd.f32 %v577, 1e-06
        %v626 = vadd.f32 %v578, 1e-06
        %v627 = vadd.f32 %v579, 1e-06
        %v628 = vadd.f32 %v580, 1e-06
        %v629 = vadd.f32 %v581, 1e-06
        %v630 = vadd.f32 %v582, 1e-06
        %v631 = vadd.f32 %v583, 1e-06
        %v632 = vadd.f32 %v584, 1e-06
        %v633 = vadd.f32 %v585, 1e-06
        %v634 = vadd.f32 %v586, 1e-06
        %v635 = vadd.f32 %v587, 1e-06
        %v636 = vadd.f32 %v588, 1e-06
        %v637 = vadd.f32 %v589, 1e-06
        %v638 = vadd.f32 %v590, 1e-06
        %v639 = vadd.f32 %v591, 1e-06
        %v640 = vadd.f32 %v592, 1e-06
        %v641 = vadd.f32 %v593, 1e-06
        %v642 = vadd.f32 %v594, 1e-06
        %v643 = vadd.f32 %v595, 1e-06
        %v644 = vadd.f32 %v596, 1e-06
        %v645 = vrsqrt.pop %v621
        %v646 = vmul.f32 %v645, %v621
        %v647 = vmul.f32 %v646, %v645
        %v648 = vmul.f32 0.5, %v647
        %v649 = vsub.f32 1.5, %v648
        %v650 = vmul.f32 %v645, %v649
        %vm651 = vweird.f32 %v621
        %vm652 = vweird.f32 %v645
        %vm653 = vmor %vm651, %vm652
        %v654 = vsel %vm653, %v645, %v650
        %v655 = vrsqrt.pop %v622
        %v656 = vmul.f32 %v655, %v622
        %v657 = vmul.f32 %v656, %v655
        %v658 = vmul.f32 0.5, %v657
        %v659 = vsub.f32 1.5, %v658
        %v660 = vmul.f32 %v655, %v659
        %vm661 = vweird.f32 %v622
        %vm662 = vweird.f32 %v655
        %vm663 = vmor %vm661, %vm662
        %v664 = vsel %vm663, %v655, %v660
        %v665 = vrsqrt.pop %v623
        %v666 = vmul.f32 %v665, %v623
        %v667 = vmul.f32 %v666, %v665
        %v668 = vmul.f32 0.5, %v667
        %v669 = vsub.f32 1.5, %v668
        %v670 = vmul.f32 %v665, %v669
        %vm671 = vweird.f32 %v623
        %vm672 = vweird.f32 %v665
        %vm673 = vmor %vm671, %vm672
        %v674 = vsel %vm673, %v665, %v670
        %v675 = vrsqrt.pop %v624
        %v676 = vmul.f32 %v675, %v624
        %v677 = vmul.f32 %v676, %v675
        %v678 = vmul.f32 0.5, %v677
        %v679 = vsub.f32 1.5, %v678
        %v680 = vmul.f32 %v675, %v679
        %vm681 = vweird.f32 %v624
        %vm682 = vweird.f32 %v675
        %vm683 = vmor %vm681, %vm682
        %v684 = vsel %vm683, %v675, %v680
        %v685 = vrsqrt.pop %v625
        %v686 = vmul.f32 %v685, %v625
        %v687 = vmul.f32 %v686, %v685
        %v688 = vmul.f32 0.5, %v687
        %v689 = vsub.f32 1.5, %v688
        %v690 = vmul.f32 %v685, %v689
        %vm691 = vweird.f32 %v625
        %vm692 = vweird.f32 %v685
        %vm693 = vmor %vm691, %vm692
        %v694 = vsel %vm693, %v685, %v690
        %v695 = vrsqrt.pop %v626
        %v696 = vmul.f32 %v695, %v626
        %v697 = vmul.f32 %v696, %v695
        %v698 = vmul.f32 0.5, %v697
        %v699 = vsub.f32 1.5, %v698
        %v700 = vmul.f32 %v695, %v699
        %vm701 = vweird.f32 %v626
        %vm702 = vweird.f32 %v695
        %vm703 = vmor %vm701, %vm702
        %v704 = vsel %vm703, %v695, %v700
        %v705 = vrsqrt.pop %v627
        %v706 = vmul.f32 %v705, %v627
        %v707 = vmul.f32 %v706, %v705
        %v708 = vmul.f32 0.5, %v707
        %v709 = vsub.f32 1.5, %v708
        %v710 = vmul.f32 %v705, %v709
        %vm711 = vweird.f32 %v627
        %vm712 = vweird.f32 %v705
        %vm713 = vmor %vm711, %vm712
        %v714 = vsel %vm713, %v705, %v710
        %v715 = vrsqrt.pop %v628
        %v716 = vmul.f32 %v715, %v628
        %v717 = vmul.f32 %v716, %v715
        %v718 = vmul.f32 0.5, %v717
        %v719 = vsub.f32 1.5, %v718
        %v720 = vmul.f32 %v715, %v719
        %vm721 = vweird.f32 %v628
        %vm722 = vweird.f32 %v715
        %vm723 = vmor %vm721, %vm722
        %v724 = vsel %vm723, %v715, %v720
        %v725 = vrsqrt.pop %v629
        %v726 = vmul.f32 %v725, %v629
        %v727 = vmul.f32 %v726, %v725
        %v728 = vmul.f32 0.5, %v727
        %v729 = vsub.f32 1.5, %v728
        %v730 = vmul.f32 %v725, %v729
        %vm731 = vweird.f32 %v629
        %vm732 = vweird.f32 %v725
        %vm733 = vmor %vm731, %vm732
        %v734 = vsel %vm733, %v725, %v730
        %v735 = vrsqrt.pop %v630
        %v736 = vmul.f32 %v735, %v630
        %v737 = vmul.f32 %v736, %v735
        %v738 = vmul.f32 0.5, %v737
        %v739 = vsub.f32 1.5, %v738
        %v740 = vmul.f32 %v735, %v739
        %vm741 = vweird.f32 %v630
        %vm742 = vweird.f32 %v735
        %vm743 = vmor %vm741, %vm742
        %v744 = vsel %vm743, %v735, %v740
        %v745 = vrsqrt.pop %v631
        %v746 = vmul.f32 %v745, %v631
        %v747 = vmul.f32 %v746, %v745
        %v748 = vmul.f32 0.5, %v747
        %v749 = vsub.f32 1.5, %v748
        %v750 = vmul.f32 %v745, %v749
        %vm751 = vweird.f32 %v631
        %vm752 = vweird.f32 %v745
        %vm753 = vmor %vm751, %vm752
        %v754 = vsel %vm753, %v745, %v750
        %v755 = vrsqrt.pop %v632
        %v756 = vmul.f32 %v755, %v632
        %v757 = vmul.f32 %v756, %v755
        %v758 = vmul.f32 0.5, %v757
        %v759 = vsub.f32 1.5, %v758
        %v760 = vmul.f32 %v755, %v759
        %vm761 = vweird.f32 %v632
        %vm762 = vweird.f32 %v755
        %vm763 = vmor %vm761, %vm762
        %v764 = vsel %vm763, %v755, %v760
        %v765 = vrsqrt.pop %v633
        %v766 = vmul.f32 %v765, %v633
        %v767 = vmul.f32 %v766, %v765
        %v768 = vmul.f32 0.5, %v767
        %v769 = vsub.f32 1.5, %v768
        %v770 = vmul.f32 %v765, %v769
        %vm771 = vweird.f32 %v633
        %vm772 = vweird.f32 %v765
        %vm773 = vmor %vm771, %vm772
        %v774 = vsel %vm773, %v765, %v770
        %v775 = vrsqrt.pop %v634
        %v776 = vmul.f32 %v775, %v634
        %v777 = vmul.f32 %v776, %v775
        %v778 = vmul.f32 0.5, %v777
        %v779 = vsub.f32 1.5, %v778
        %v780 = vmul.f32 %v775, %v779
        %vm781 = vweird.f32 %v634
        %vm782 = vweird.f32 %v775
        %vm783 = vmor %vm781, %vm782
        %v784 = vsel %vm783, %v775, %v780
        %v785 = vrsqrt.pop %v635
        %v786 = vmul.f32 %v785, %v635
        %v787 = vmul.f32 %v786, %v785
        %v788 = vmul.f32 0.5, %v787
        %v789 = vsub.f32 1.5, %v788
        %v790 = vmul.f32 %v785, %v789
        %vm791 = vweird.f32 %v635
        %vm792 = vweird.f32 %v785
        %vm793 = vmor %vm791, %vm792
        %v794 = vsel %vm793, %v785, %v790
        %v795 = vrsqrt.pop %v636
        %v796 = vmul.f32 %v795, %v636
        %v797 = vmul.f32 %v796, %v795
        %v798 = vmul.f32 0.5, %v797
        %v799 = vsub.f32 1.5, %v798
        %v800 = vmul.f32 %v795, %v799
        %vm801 = vweird.f32 %v636
        %vm802 = vweird.f32 %v795
        %vm803 = vmor %vm801, %vm802
        %v804 = vsel %vm803, %v795, %v800
        %v805 = vrsqrt.pop %v637
        %v806 = vmul.f32 %v805, %v637
        %v807 = vmul.f32 %v806, %v805
        %v808 = vmul.f32 0.5, %v807
        %v809 = vsub.f32 1.5, %v808
        %v810 = vmul.f32 %v805, %v809
        %vm811 = vweird.f32 %v637
        %vm812 = vweird.f32 %v805
        %vm813 = vmor %vm811, %vm812
        %v814 = vsel %vm813, %v805, %v810
        %v815 = vrsqrt.pop %v638
        %v816 = vmul.f32 %v815, %v638
        %v817 = vmul.f32 %v816, %v815
        %v818 = vmul.f32 0.5, %v817
        %v819 = vsub.f32 1.5, %v818
        %v820 = vmul.f32 %v815, %v819
        %vm821 = vweird.f32 %v638
        %vm822 = vweird.f32 %v815
        %vm823 = vmor %vm821, %vm822
        %v824 = vsel %vm823, %v815, %v820
        %v825 = vrsqrt.pop %v639
        %v826 = vmul.f32 %v825, %v639
        %v827 = vmul.f32 %v826, %v825
        %v828 = vmul.f32 0.5, %v827
        %v829 = vsub.f32 1.5, %v828
        %v830 = vmul.f32 %v825, %v829
        %vm831 = vweird.f32 %v639
        %vm832 = vweird.f32 %v825
        %vm833 = vmor %vm831, %vm832
        %v834 = vsel %vm833, %v825, %v830
        %v835 = vrsqrt.pop %v640
        %v836 = vmul.f32 %v835, %v640
        %v837 = vmul.f32 %v836, %v835
        %v838 = vmul.f32 0.5, %v837
        %v839 = vsub.f32 1.5, %v838
        %v840 = vmul.f32 %v835, %v839
        %vm841 = vweird.f32 %v640
        %vm842 = vweird.f32 %v835
        %vm843 = vmor %vm841, %vm842
        %v844 = vsel %vm843, %v835, %v840
        %v845 = vrsqrt.pop %v641
        %v846 = vmul.f32 %v845, %v641
        %v847 = vmul.f32 %v846, %v845
        %v848 = vmul.f32 0.5, %v847
        %v849 = vsub.f32 1.5, %v848
        %v850 = vmul.f32 %v845, %v849
        %vm851 = vweird.f32 %v641
        %vm852 = vweird.f32 %v845
        %vm853 = vmor %vm851, %vm852
        %v854 = vsel %vm853, %v845, %v850
        %v855 = vrsqrt.pop %v642
        %v856 = vmul.f32 %v855, %v642
        %v857 = vmul.f32 %v856, %v855
        %v858 = vmul.f32 0.5, %v857
        %v859 = vsub.f32 1.5, %v858
        %v860 = vmul.f32 %v855, %v859
        %vm861 = vweird.f32 %v642
        %vm862 = vweird.f32 %v855
        %vm863 = vmor %vm861, %vm862
        %v864 = vsel %vm863, %v855, %v860
        %v865 = vrsqrt.pop %v643
        %v866 = vmul.f32 %v865, %v643
        %v867 = vmul.f32 %v866, %v865
        %v868 = vmul.f32 0.5, %v867
        %v869 = vsub.f32 1.5, %v868
        %v870 = vmul.f32 %v865, %v869
        %vm871 = vweird.f32 %v643
        %vm872 = vweird.f32 %v865
        %vm873 = vmor %vm871, %vm872
        %v874 = vsel %vm873, %v865, %v870
        %v875 = vrsqrt.pop %v644
        %v876 = vmul.f32 %v875, %v644
        %v877 = vmul.f32 %v876, %v875
        %v878 = vmul.f32 0.5, %v877
        %v879 = vsub.f32 1.5, %v878
        %v880 = vmul.f32 %v875, %v879
        %vm881 = vweird.f32 %v644
        %vm882 = vweird.f32 %v875
        %vm883 = vmor %vm881, %vm882
        %v884 = vsel %vm883, %v875, %v880
        %v885 = vmul.f32 %v597, %v654
        %v886 = vmul.f32 %v598, %v664
        %v887 = vmul.f32 %v599, %v674
        %v888 = vmul.f32 %v600, %v684
        %v889 = vmul.f32 %v601, %v694
        %v890 = vmul.f32 %v602, %v704
        %v891 = vmul.f32 %v603, %v714
        %v892 = vmul.f32 %v604, %v724
        %v893 = vmul.f32 %v605, %v734
        %v894 = vmul.f32 %v606, %v744
        %v895 = vmul.f32 %v607, %v754
        %v896 = vmul.f32 %v608, %v764
        %v897 = vmul.f32 %v609, %v774
        %v898 = vmul.f32 %v610, %v784
        %v899 = vmul.f32 %v611, %v794
        %v900 = vmul.f32 %v612, %v804
        %v901 = vmul.f32 %v613, %v814
        %v902 = vmul.f32 %v614, %v824
        %v903 = vmul.f32 %v615, %v834
        %v904 = vmul.f32 %v616, %v844
        %v905 = vmul.f32 %v617, %v854
        %v906 = vmul.f32 %v618, %v864
        %v907 = vmul.f32 %v619, %v874
        %v908 = vmul.f32 %v620, %v884
        %v909 = vpack.c.bf16 %v886, %v885
        %v910 = vpack.c.bf16 %v888, %v887
        %v911 = vpack.c.bf16 %v890, %v889
        %v912 = vpack.c.bf16 %v892, %v891
        %v913 = vpack.c.bf16 %v894, %v893
        %v914 = vpack.c.bf16 %v896, %v895
        %v915 = vpack.c.bf16 %v898, %v897
        %v916 = vpack.c.bf16 %v900, %v899
        %v917 = vpack.c.bf16 %v902, %v901
        %v918 = vpack.c.bf16 %v904, %v903
        %v919 = vpack.c.bf16 %v906, %v905
        %v920 = vpack.c.bf16 %v908, %v907
        %v921 = vld [vmem:[%s1] sm:$0x3]
        %v922 = vld [vmem:[%s3] sm:$0x1]
        %v923 = vperm.slane %v922, 0
        %v925 = vsel %vm301, %v909, 0
        %v928 = vsel %vm301, %v910, 0
        %v931 = vsel %vm301, %v911, 0
        %v934 = vsel %vm301, %v912, 0
        %v937 = vsel %vm301, %v913, 0
        %v940 = vsel %vm301, %v914, 0
        %v943 = vsel %vm301, %v915, 0
        %v946 = vsel %vm301, %v916, 0
        %v949 = vsel %vm301, %v917, 0
        %v952 = vsel %vm301, %v918, 0
        %v955 = vsel %vm301, %v919, 0
        %v958 = vsel %vm301, %v920, 0
        %vm960 = vcmask 1041408
        %v962 = vsel %vm960, %v921, 0
        %964 = vmatpush.bf16.msra.mxu0 0
        %965 = vmatpush.bf16.msra.mxu0 0
        %966 = vmatpush.bf16.msra.mxu0 0
        %967 = vmatpush.bf16.msra.mxu0 0
        %968 = vmatpush.bf16.msra.mxu0 0
        %969 = vmatpush.bf16.msra.mxu0 0
        %970 = vmatpush.bf16.msra.mxu0 0
        %971 = vmatpush.bf16.msra.mxu0 %v962
        %972 = vmatmul.bf16.gmra.mxu0 %v925
        %v973 = vpop.f32.mrf.mxu0
        %v974 = vadd.f32 %v923, %v973
        %v975 = vpop.f32.mrf.mxu0
        %v976 = vadd.f32 %v923, %v975
        %977 = vmatmul.bf16.gmra.mxu0 %v928
        %v978 = vpop.f32.mrf.mxu0
        %v979 = vadd.f32 %v923, %v978
        %v980 = vpop.f32.mrf.mxu0
        %v981 = vadd.f32 %v923, %v980
        %982 = vmatmul.bf16.gmra.mxu0 %v931
        %v983 = vpop.f32.mrf.mxu0
        %v984 = vadd.f32 %v923, %v983
        %v985 = vpop.f32.mrf.mxu0
        %v986 = vadd.f32 %v923, %v985
        %987 = vmatmul.bf16.gmra.mxu0 %v934
        %v988 = vpop.f32.mrf.mxu0
        %v989 = vadd.f32 %v923, %v988
        %v990 = vpop.f32.mrf.mxu0
        %v991 = vadd.f32 %v923, %v990
        %992 = vmatmul.bf16.gmra.mxu0 %v937
        %v993 = vpop.f32.mrf.mxu0
        %v994 = vadd.f32 %v923, %v993
        %v995 = vpop.f32.mrf.mxu0
        %v996 = vadd.f32 %v923, %v995
        %997 = vmatmul.bf16.gmra.mxu0 %v940
        %v998 = vpop.f32.mrf.mxu0
        %v999 = vadd.f32 %v923, %v998
        %v1000 = vpop.f32.mrf.mxu0
        %v1001 = vadd.f32 %v923, %v1000
        %1002 = vmatmul.bf16.gmra.mxu0 %v943
        %v1003 = vpop.f32.mrf.mxu0
        %v1004 = vadd.f32 %v923, %v1003
        %v1005 = vpop.f32.mrf.mxu0
        %v1006 = vadd.f32 %v923, %v1005
        %1007 = vmatmul.bf16.gmra.mxu0 %v946
        %v1008 = vpop.f32.mrf.mxu0
        %v1009 = vadd.f32 %v923, %v1008
        %v1010 = vpop.f32.mrf.mxu0
        %v1011 = vadd.f32 %v923, %v1010
        %1012 = vmatmul.bf16.gmra.mxu0 %v949
        %v1013 = vpop.f32.mrf.mxu0
        %v1014 = vadd.f32 %v923, %v1013
        %v1015 = vpop.f32.mrf.mxu0
        %v1016 = vadd.f32 %v923, %v1015
        %1017 = vmatmul.bf16.gmra.mxu0 %v952
        %v1018 = vpop.f32.mrf.mxu0
        %v1019 = vadd.f32 %v923, %v1018
        %v1020 = vpop.f32.mrf.mxu0
        %v1021 = vadd.f32 %v923, %v1020
        %1022 = vmatmul.bf16.gmra.mxu0 %v955
        %v1023 = vpop.f32.mrf.mxu0
        %v1024 = vadd.f32 %v923, %v1023
        %v1025 = vpop.f32.mrf.mxu0
        %v1026 = vadd.f32 %v923, %v1025
        %1027 = vmatmul.bf16.gmra.mxu0 %v958
        %v1028 = vpop.f32.mrf.mxu0
        %v1029 = vadd.f32 %v923, %v1028
        %v1030 = vpop.f32.mrf.mxu0
        %v1031 = vadd.f32 %v923, %v1030
        %1032 = vdwg.mxu0
        %v1033 = vlaneseq
        %v1034 = vshrl.u32 %v1033, 7
        %v1035 = vadd.s32 %v1034, 8
        %v1036 = vadd.s32 %v1034, 16
        %v1037 = vadd.s32 %v1034, 24
        %v1038 = vadd.s32 %v1034, 32
        %v1039 = vadd.s32 %v1034, 40
        %v1040 = vadd.s32 %v1034, 48
        %v1041 = vadd.s32 %v1034, 56
        %v1042 = vadd.s32 %v1034, 64
        %v1043 = vadd.s32 %v1034, 72
        %v1044 = vadd.s32 %v1034, 80
        %v1045 = vadd.s32 %v1034, 88
        %v1046 = vadd.s32 %v1034, 96
        %v1047 = vadd.s32 %v1034, 104
        %v1048 = vadd.s32 %v1034, 112
        %v1049 = vadd.s32 %v1034, 120
        %v1050 = vadd.s32 %v1034, 128
        %v1051 = vadd.s32 %v1034, 136
        %v1052 = vadd.s32 %v1034, 144
        %v1053 = vadd.s32 %v1034, 152
        %v1054 = vadd.s32 %v1034, 160
        %v1055 = vadd.s32 %v1034, 168
        %v1056 = vadd.s32 %v1034, 176
        %v1057 = vadd.s32 %v1034, 184
        %s1058 = smul.u32 %s25, 8
        %s1059 = ssub.s32 2, %s1058
        %s1060 = smul.u32 %s1059, 16
        %s1061 = ssub.s32 18, %s1058
        %s1062 = smul.u32 %s1061, 16
        %v1063 = vstv %s1060
        %vm1064 = vcmp.ge.s32.totalorder %v1034, %v1063
        %vm1065 = vcmp.ge.s32.totalorder %v1035, %v1063
        %vm1066 = vcmp.ge.s32.totalorder %v1036, %v1063
        %vm1067 = vcmp.ge.s32.totalorder %v1037, %v1063
        %vm1068 = vcmp.ge.s32.totalorder %v1038, %v1063
        %vm1069 = vcmp.ge.s32.totalorder %v1039, %v1063
        %vm1070 = vcmp.ge.s32.totalorder %v1040, %v1063
        %vm1071 = vcmp.ge.s32.totalorder %v1041, %v1063
        %vm1072 = vcmp.ge.s32.totalorder %v1042, %v1063
        %vm1073 = vcmp.ge.s32.totalorder %v1043, %v1063
        %vm1074 = vcmp.ge.s32.totalorder %v1044, %v1063
        %vm1075 = vcmp.ge.s32.totalorder %v1045, %v1063
        %vm1076 = vcmp.ge.s32.totalorder %v1046, %v1063
        %vm1077 = vcmp.ge.s32.totalorder %v1047, %v1063
        %vm1078 = vcmp.ge.s32.totalorder %v1048, %v1063
        %vm1079 = vcmp.ge.s32.totalorder %v1049, %v1063
        %vm1080 = vcmp.ge.s32.totalorder %v1050, %v1063
        %vm1081 = vcmp.ge.s32.totalorder %v1051, %v1063
        %vm1082 = vcmp.ge.s32.totalorder %v1052, %v1063
        %vm1083 = vcmp.ge.s32.totalorder %v1053, %v1063
        %vm1084 = vcmp.ge.s32.totalorder %v1054, %v1063
        %vm1085 = vcmp.ge.s32.totalorder %v1055, %v1063
        %vm1086 = vcmp.ge.s32.totalorder %v1056, %v1063
        %vm1087 = vcmp.ge.s32.totalorder %v1057, %v1063
        %v1088 = vstv %s1062
        %vm1089 = vcmp.lt.s32.totalorder %v1034, %v1088
        %vm1090 = vcmp.lt.s32.totalorder %v1035, %v1088
        %vm1091 = vcmp.lt.s32.totalorder %v1036, %v1088
        %vm1092 = vcmp.lt.s32.totalorder %v1037, %v1088
        %vm1093 = vcmp.lt.s32.totalorder %v1038, %v1088
        %vm1094 = vcmp.lt.s32.totalorder %v1039, %v1088
        %vm1095 = vcmp.lt.s32.totalorder %v1040, %v1088
        %vm1096 = vcmp.lt.s32.totalorder %v1041, %v1088
        %vm1097 = vcmp.lt.s32.totalorder %v1042, %v1088
        %vm1098 = vcmp.lt.s32.totalorder %v1043, %v1088
        %vm1099 = vcmp.lt.s32.totalorder %v1044, %v1088
        %vm1100 = vcmp.lt.s32.totalorder %v1045, %v1088
        %vm1101 = vcmp.lt.s32.totalorder %v1046, %v1088
        %vm1102 = vcmp.lt.s32.totalorder %v1047, %v1088
        %vm1103 = vcmp.lt.s32.totalorder %v1048, %v1088
        %vm1104 = vcmp.lt.s32.totalorder %v1049, %v1088
        %vm1105 = vcmp.lt.s32.totalorder %v1050, %v1088
        %vm1106 = vcmp.lt.s32.totalorder %v1051, %v1088
        %vm1107 = vcmp.lt.s32.totalorder %v1052, %v1088
        %vm1108 = vcmp.lt.s32.totalorder %v1053, %v1088
        %vm1109 = vcmp.lt.s32.totalorder %v1054, %v1088
        %vm1110 = vcmp.lt.s32.totalorder %v1055, %v1088
        %vm1111 = vcmp.lt.s32.totalorder %v1056, %v1088
        %vm1112 = vcmp.lt.s32.totalorder %v1057, %v1088
        %vm1113 = vmand %vm1064, %vm1089
        %vm1114 = vmand %vm1065, %vm1090
        %vm1115 = vmand %vm1066, %vm1091
        %vm1116 = vmand %vm1067, %vm1092
        %vm1117 = vmand %vm1068, %vm1093
        %vm1118 = vmand %vm1069, %vm1094
        %vm1119 = vmand %vm1070, %vm1095
        %vm1120 = vmand %vm1071, %vm1096
        %vm1121 = vmand %vm1072, %vm1097
        %vm1122 = vmand %vm1073, %vm1098
        %vm1123 = vmand %vm1074, %vm1099
        %vm1124 = vmand %vm1075, %vm1100
        %vm1125 = vmand %vm1076, %vm1101
        %vm1126 = vmand %vm1077, %vm1102
        %vm1127 = vmand %vm1078, %vm1103
        %vm1128 = vmand %vm1079, %vm1104
        %vm1129 = vmand %vm1080, %vm1105
        %vm1130 = vmand %vm1081, %vm1106
        %vm1131 = vmand %vm1082, %vm1107
        %vm1132 = vmand %vm1083, %vm1108
        %vm1133 = vmand %vm1084, %vm1109
        %vm1134 = vmand %vm1085, %vm1110
        %vm1135 = vmand %vm1086, %vm1111
        %vm1136 = vmand %vm1087, %vm1112
        %v1137 = vsel %vm1113, 1, 0
        %v1138 = vsel %vm1114, 1, 0
        %v1139 = vsel %vm1115, 1, 0
        %v1140 = vsel %vm1116, 1, 0
        %v1141 = vsel %vm1117, 1, 0
        %v1142 = vsel %vm1118, 1, 0
        %v1143 = vsel %vm1119, 1, 0
        %v1144 = vsel %vm1120, 1, 0
        %v1145 = vsel %vm1121, 1, 0
        %v1146 = vsel %vm1122, 1, 0
        %v1147 = vsel %vm1123, 1, 0
        %v1148 = vsel %vm1124, 1, 0
        %v1149 = vsel %vm1125, 1, 0
        %v1150 = vsel %vm1126, 1, 0
        %v1151 = vsel %vm1127, 1, 0
        %v1152 = vsel %vm1128, 1, 0
        %v1153 = vsel %vm1129, 1, 0
        %v1154 = vsel %vm1130, 1, 0
        %v1155 = vsel %vm1131, 1, 0
        %v1156 = vsel %vm1132, 1, 0
        %v1157 = vsel %vm1133, 1, 0
        %v1158 = vsel %vm1134, 1, 0
        %v1159 = vsel %vm1135, 1, 0
        %v1160 = vsel %vm1136, 1, 0
        %vm1161 = vcmp.eq.s32.totalorder %v1137, 1
        %vm1162 = vcmp.eq.s32.totalorder %v1138, 1
        %vm1163 = vcmp.eq.s32.totalorder %v1139, 1
        %vm1164 = vcmp.eq.s32.totalorder %v1140, 1
        %vm1165 = vcmp.eq.s32.totalorder %v1141, 1
        %vm1166 = vcmp.eq.s32.totalorder %v1142, 1
        %vm1167 = vcmp.eq.s32.totalorder %v1143, 1
        %vm1168 = vcmp.eq.s32.totalorder %v1144, 1
        %vm1169 = vcmp.eq.s32.totalorder %v1145, 1
        %vm1170 = vcmp.eq.s32.totalorder %v1146, 1
        %vm1171 = vcmp.eq.s32.totalorder %v1147, 1
        %vm1172 = vcmp.eq.s32.totalorder %v1148, 1
        %vm1173 = vcmp.eq.s32.totalorder %v1149, 1
        %vm1174 = vcmp.eq.s32.totalorder %v1150, 1
        %vm1175 = vcmp.eq.s32.totalorder %v1151, 1
        %vm1176 = vcmp.eq.s32.totalorder %v1152, 1
        %vm1177 = vcmp.eq.s32.totalorder %v1153, 1
        %vm1178 = vcmp.eq.s32.totalorder %v1154, 1
        %vm1179 = vcmp.eq.s32.totalorder %v1155, 1
        %vm1180 = vcmp.eq.s32.totalorder %v1156, 1
        %vm1181 = vcmp.eq.s32.totalorder %v1157, 1
        %vm1182 = vcmp.eq.s32.totalorder %v1158, 1
        %vm1183 = vcmp.eq.s32.totalorder %v1159, 1
        %vm1184 = vcmp.eq.s32.totalorder %v1160, 1
        %v1185 = vsel %vm1161, %v974, 0.0
        %v1186 = vsel %vm1162, %v976, 0.0
        %v1187 = vsel %vm1163, %v979, 0.0
        %v1188 = vsel %vm1164, %v981, 0.0
        %v1189 = vsel %vm1165, %v984, 0.0
        %v1190 = vsel %vm1166, %v986, 0.0
        %v1191 = vsel %vm1167, %v989, 0.0
        %v1192 = vsel %vm1168, %v991, 0.0
        %v1193 = vsel %vm1169, %v994, 0.0
        %v1194 = vsel %vm1170, %v996, 0.0
        %v1195 = vsel %vm1171, %v999, 0.0
        %v1196 = vsel %vm1172, %v1001, 0.0
        %v1197 = vsel %vm1173, %v1004, 0.0
        %v1198 = vsel %vm1174, %v1006, 0.0
        %v1199 = vsel %vm1175, %v1009, 0.0
        %v1200 = vsel %vm1176, %v1011, 0.0
        %v1201 = vsel %vm1177, %v1014, 0.0
        %v1202 = vsel %vm1178, %v1016, 0.0
        %v1203 = vsel %vm1179, %v1019, 0.0
        %v1204 = vsel %vm1180, %v1021, 0.0
        %v1205 = vsel %vm1181, %v1024, 0.0
        %v1206 = vsel %vm1182, %v1026, 0.0
        %v1207 = vsel %vm1183, %v1029, 0.0
        %v1208 = vsel %vm1184, %v1031, 0.0
        %v1225 = vrot.slane %v1185, 6
        %v1226 = vrot.slane %v1186, 6
        %v1227 = vsel %vm960, %v1225, %v1226
        %v1228 = vrot.slane %v1187, 6
        %v1229 = vrot.slane %v1188, 6
        %v1230 = vsel %vm960, %v1228, %v1229
        %v1231 = vrot.slane %v1189, 6
        %v1232 = vrot.slane %v1190, 6
        %v1233 = vsel %vm960, %v1231, %v1232
        %v1234 = vrot.slane %v1191, 6
        %v1235 = vrot.slane %v1192, 6
        %v1236 = vsel %vm960, %v1234, %v1235
        %v1237 = vrot.slane %v1193, 6
        %v1238 = vrot.slane %v1194, 6
        %v1239 = vsel %vm960, %v1237, %v1238
        %v1240 = vrot.slane %v1195, 6
        %v1241 = vrot.slane %v1196, 6
        %v1242 = vsel %vm960, %v1240, %v1241
        %v1243 = vrot.slane %v1197, 6
        %v1244 = vrot.slane %v1198, 6
        %v1245 = vsel %vm960, %v1243, %v1244
        %v1246 = vrot.slane %v1199, 6
        %v1247 = vrot.slane %v1200, 6
        %v1248 = vsel %vm960, %v1246, %v1247
        %v1265 = vsel %vm960, 0.0, %v1225
        %v1266 = vsel %vm960, 0.0, %v1228
        %v1267 = vsel %vm960, 0.0, %v1231
        %v1268 = vsel %vm960, 0.0, %v1234
        %v1269 = vsel %vm960, 0.0, %v1237
        %v1270 = vsel %vm960, 0.0, %v1240
        %v1271 = vsel %vm960, 0.0, %v1243
        %v1272 = vsel %vm960, 0.0, %v1246
        %vm1273 = vcmask 1045504
        %v1274 = vrot.slane %v1185, 2
        %v1275 = vrot.slane %v1186, 2
        %v1276 = vsel %vm1273, %v1274, %v1275
        %v1277 = vrot.slane %v1187, 2
        %v1278 = vrot.slane %v1188, 2
        %v1279 = vsel %vm1273, %v1277, %v1278
        %v1280 = vrot.slane %v1189, 2
        %v1281 = vrot.slane %v1190, 2
        %v1282 = vsel %vm1273, %v1280, %v1281
        %v1283 = vrot.slane %v1191, 2
        %v1284 = vrot.slane %v1192, 2
        %v1285 = vsel %vm1273, %v1283, %v1284
        %v1286 = vrot.slane %v1193, 2
        %v1287 = vrot.slane %v1194, 2
        %v1288 = vsel %vm1273, %v1286, %v1287
        %v1289 = vrot.slane %v1195, 2
        %v1290 = vrot.slane %v1196, 2
        %v1291 = vsel %vm1273, %v1289, %v1290
        %v1292 = vrot.slane %v1197, 2
        %v1293 = vrot.slane %v1198, 2
        %v1294 = vsel %vm1273, %v1292, %v1293
        %v1295 = vrot.slane %v1199, 2
        %v1296 = vrot.slane %v1200, 2
        %v1297 = vsel %vm1273, %v1295, %v1296
        %v1314 = vsel %vm1273, %v1275, 0.0
        %v1315 = vsel %vm1273, %v1278, 0.0
        %v1316 = vsel %vm1273, %v1281, 0.0
        %v1317 = vsel %vm1273, %v1284, 0.0
        %v1318 = vsel %vm1273, %v1287, 0.0
        %v1319 = vsel %vm1273, %v1290, 0.0
        %v1320 = vsel %vm1273, %v1293, 0.0
        %v1321 = vsel %vm1273, %v1296, 0.0
        %v1322 = vld [vmem:[%s2] sm:$0x1]
        %v1323 = vperm.slane %v1322, 0
        %v1324 = vmul.f32 %v1265, %v1323
        %v1325 = vmul.f32 %v1227, %v1323
        %v1326 = vmul.f32 %v1266, %v1323
        %v1327 = vmul.f32 %v1230, %v1323
        %v1328 = vmul.f32 %v1267, %v1323
        %v1329 = vmul.f32 %v1233, %v1323
        %v1330 = vmul.f32 %v1268, %v1323
        %v1331 = vmul.f32 %v1236, %v1323
        %v1332 = vmul.f32 %v1269, %v1323
        %v1333 = vmul.f32 %v1239, %v1323
        %v1334 = vmul.f32 %v1270, %v1323
        %v1335 = vmul.f32 %v1242, %v1323
        %v1336 = vmul.f32 %v1271, %v1323
        %v1337 = vmul.f32 %v1245, %v1323
        %v1338 = vmul.f32 %v1272, %v1323
        %v1339 = vmul.f32 %v1248, %v1323
        %v1340 = vld [vmem:[%s3 + $0x1] sm:$0x1]
        %v1341 = vperm.slane %v1340, 0
        %v1342 = vadd.f32 %v1324, %v1341
        %v1343 = vadd.f32 %v1325, %v1341
        %v1344 = vadd.f32 %v1326, %v1341
        %v1345 = vadd.f32 %v1327, %v1341
        %v1346 = vadd.f32 %v1328, %v1341
        %v1347 = vadd.f32 %v1329, %v1341
        %v1348 = vadd.f32 %v1330, %v1341
        %v1349 = vadd.f32 %v1331, %v1341
        %v1350 = vadd.f32 %v1332, %v1341
        %v1351 = vadd.f32 %v1333, %v1341
        %v1352 = vadd.f32 %v1334, %v1341
        %v1353 = vadd.f32 %v1335, %v1341
        %v1354 = vadd.f32 %v1336, %v1341
        %v1355 = vadd.f32 %v1337, %v1341
        %v1356 = vadd.f32 %v1338, %v1341
        %v1357 = vadd.f32 %v1339, %v1341
        %v1358 = vld [vmem:[%s2 + $0x1] sm:$0x1]
        %v1359 = vperm.slane %v1358, 0
        %v1360 = vmul.f32 %v1185, %v1359
        %v1361 = vmul.f32 %v1186, %v1359
        %v1362 = vmul.f32 %v1187, %v1359
        %v1363 = vmul.f32 %v1188, %v1359
        %v1364 = vmul.f32 %v1189, %v1359
        %v1365 = vmul.f32 %v1190, %v1359
        %v1366 = vmul.f32 %v1191, %v1359
        %v1367 = vmul.f32 %v1192, %v1359
        %v1368 = vmul.f32 %v1193, %v1359
        %v1369 = vmul.f32 %v1194, %v1359
        %v1370 = vmul.f32 %v1195, %v1359
        %v1371 = vmul.f32 %v1196, %v1359
        %v1372 = vmul.f32 %v1197, %v1359
        %v1373 = vmul.f32 %v1198, %v1359
        %v1374 = vmul.f32 %v1199, %v1359
        %v1375 = vmul.f32 %v1200, %v1359
        %v1376 = vadd.f32 %v1342, %v1360
        %v1377 = vadd.f32 %v1343, %v1361
        %v1378 = vadd.f32 %v1344, %v1362
        %v1379 = vadd.f32 %v1345, %v1363
        %v1380 = vadd.f32 %v1346, %v1364
        %v1381 = vadd.f32 %v1347, %v1365
        %v1382 = vadd.f32 %v1348, %v1366
        %v1383 = vadd.f32 %v1349, %v1367
        %v1384 = vadd.f32 %v1350, %v1368
        %v1385 = vadd.f32 %v1351, %v1369
        %v1386 = vadd.f32 %v1352, %v1370
        %v1387 = vadd.f32 %v1353, %v1371
        %v1388 = vadd.f32 %v1354, %v1372
        %v1389 = vadd.f32 %v1355, %v1373
        %v1390 = vadd.f32 %v1356, %v1374
        %v1391 = vadd.f32 %v1357, %v1375
        %v1392 = vld [vmem:[%s2 + $0x2] sm:$0x1]
        %v1393 = vperm.slane %v1392, 0
        %v1394 = vmul.f32 %v1276, %v1393
        %v1395 = vmul.f32 %v1314, %v1393
        %v1396 = vmul.f32 %v1279, %v1393
        %v1397 = vmul.f32 %v1315, %v1393
        %v1398 = vmul.f32 %v1282, %v1393
        %v1399 = vmul.f32 %v1316, %v1393
        %v1400 = vmul.f32 %v1285, %v1393
        %v1401 = vmul.f32 %v1317, %v1393
        %v1402 = vmul.f32 %v1288, %v1393
        %v1403 = vmul.f32 %v1318, %v1393
        %v1404 = vmul.f32 %v1291, %v1393
        %v1405 = vmul.f32 %v1319, %v1393
        %v1406 = vmul.f32 %v1294, %v1393
        %v1407 = vmul.f32 %v1320, %v1393
        %v1408 = vmul.f32 %v1297, %v1393
        %v1409 = vmul.f32 %v1321, %v1393
        %v1410 = vadd.f32 %v1376, %v1394
        %v1411 = vadd.f32 %v1377, %v1395
        %v1412 = vadd.f32 %v1378, %v1396
        %v1413 = vadd.f32 %v1379, %v1397
        %v1414 = vadd.f32 %v1380, %v1398
        %v1415 = vadd.f32 %v1381, %v1399
        %v1416 = vadd.f32 %v1382, %v1400
        %v1417 = vadd.f32 %v1383, %v1401
        %v1418 = vadd.f32 %v1384, %v1402
        %v1419 = vadd.f32 %v1385, %v1403
        %v1420 = vadd.f32 %v1386, %v1404
        %v1421 = vadd.f32 %v1387, %v1405
        %v1422 = vadd.f32 %v1388, %v1406
        %v1423 = vadd.f32 %v1389, %v1407
        %v1424 = vadd.f32 %v1390, %v1408
        %v1425 = vadd.f32 %v1391, %v1409
        %v1430 = vrot.slane %v1201, 6
        %v1431 = vrot.slane %v1202, 6
        %v1432 = vsel %vm960, %v1430, %v1431
        %v1433 = vrot.slane %v1203, 6
        %v1434 = vrot.slane %v1204, 6
        %v1435 = vsel %vm960, %v1433, %v1434
        %v1440 = vsel %vm960, 0.0, %v1430
        %v1441 = vsel %vm960, 0.0, %v1433
        %v1442 = vrot.slane %v1201, 2
        %v1443 = vrot.slane %v1202, 2
        %v1444 = vsel %vm1273, %v1442, %v1443
        %v1445 = vrot.slane %v1203, 2
        %v1446 = vrot.slane %v1204, 2
        %v1447 = vsel %vm1273, %v1445, %v1446
        %v1452 = vsel %vm1273, %v1443, 0.0
        %v1453 = vsel %vm1273, %v1446, 0.0
        %v1454 = vld [vmem:[%s2 + $0x3] sm:$0x1]
        %v1455 = vperm.slane %v1454, 0
        %v1456 = vmul.f32 %v1267, %v1455
        %v1457 = vmul.f32 %v1233, %v1455
        %v1458 = vmul.f32 %v1268, %v1455
        %v1459 = vmul.f32 %v1236, %v1455
        %v1460 = vmul.f32 %v1269, %v1455
        %v1461 = vmul.f32 %v1239, %v1455
        %v1462 = vmul.f32 %v1270, %v1455
        %v1463 = vmul.f32 %v1242, %v1455
        %v1464 = vmul.f32 %v1271, %v1455
        %v1465 = vmul.f32 %v1245, %v1455
        %v1466 = vmul.f32 %v1272, %v1455
        %v1467 = vmul.f32 %v1248, %v1455
        %v1468 = vmul.f32 %v1440, %v1455
        %v1469 = vmul.f32 %v1432, %v1455
        %v1470 = vmul.f32 %v1441, %v1455
        %v1471 = vmul.f32 %v1435, %v1455
        %v1472 = vadd.f32 %v1410, %v1456
        %v1473 = vadd.f32 %v1411, %v1457
        %v1474 = vadd.f32 %v1412, %v1458
        %v1475 = vadd.f32 %v1413, %v1459
        %v1476 = vadd.f32 %v1414, %v1460
        %v1477 = vadd.f32 %v1415, %v1461
        %v1478 = vadd.f32 %v1416, %v1462
        %v1479 = vadd.f32 %v1417, %v1463
        %v1480 = vadd.f32 %v1418, %v1464
        %v1481 = vadd.f32 %v1419, %v1465
        %v1482 = vadd.f32 %v1420, %v1466
        %v1483 = vadd.f32 %v1421, %v1467
        %v1484 = vadd.f32 %v1422, %v1468
        %v1485 = vadd.f32 %v1423, %v1469
        %v1486 = vadd.f32 %v1424, %v1470
        %v1487 = vadd.f32 %v1425, %v1471
        %v1488 = vld [vmem:[%s2 + $0x4] sm:$0x1]
        %v1489 = vperm.slane %v1488, 0
        %v1490 = vmul.f32 %v1189, %v1489
        %v1491 = vmul.f32 %v1190, %v1489
        %v1492 = vmul.f32 %v1191, %v1489
        %v1493 = vmul.f32 %v1192, %v1489
        %v1494 = vmul.f32 %v1193, %v1489
        %v1495 = vmul.f32 %v1194, %v1489
        %v1496 = vmul.f32 %v1195, %v1489
        %v1497 = vmul.f32 %v1196, %v1489
        %v1498 = vmul.f32 %v1197, %v1489
        %v1499 = vmul.f32 %v1198, %v1489
        %v1500 = vmul.f32 %v1199, %v1489
        %v1501 = vmul.f32 %v1200, %v1489
        %v1502 = vmul.f32 %v1201, %v1489
        %v1503 = vmul.f32 %v1202, %v1489
        %v1504 = vmul.f32 %v1203, %v1489
        %v1505 = vmul.f32 %v1204, %v1489
        %v1506 = vadd.f32 %v1472, %v1490
        %v1507 = vadd.f32 %v1473, %v1491
        %v1508 = vadd.f32 %v1474, %v1492
        %v1509 = vadd.f32 %v1475, %v1493
        %v1510 = vadd.f32 %v1476, %v1494
        %v1511 = vadd.f32 %v1477, %v1495
        %v1512 = vadd.f32 %v1478, %v1496
        %v1513 = vadd.f32 %v1479, %v1497
        %v1514 = vadd.f32 %v1480, %v1498
        %v1515 = vadd.f32 %v1481, %v1499
        %v1516 = vadd.f32 %v1482, %v1500
        %v1517 = vadd.f32 %v1483, %v1501
        %v1518 = vadd.f32 %v1484, %v1502
        %v1519 = vadd.f32 %v1485, %v1503
        %v1520 = vadd.f32 %v1486, %v1504
        %v1521 = vadd.f32 %v1487, %v1505
        %v1522 = vld [vmem:[%s2 + $0x5] sm:$0x1]
        %v1523 = vperm.slane %v1522, 0
        %v1524 = vmul.f32 %v1282, %v1523
        %v1525 = vmul.f32 %v1316, %v1523
        %v1526 = vmul.f32 %v1285, %v1523
        %v1527 = vmul.f32 %v1317, %v1523
        %v1528 = vmul.f32 %v1288, %v1523
        %v1529 = vmul.f32 %v1318, %v1523
        %v1530 = vmul.f32 %v1291, %v1523
        %v1531 = vmul.f32 %v1319, %v1523
        %v1532 = vmul.f32 %v1294, %v1523
        %v1533 = vmul.f32 %v1320, %v1523
        %v1534 = vmul.f32 %v1297, %v1523
        %v1535 = vmul.f32 %v1321, %v1523
        %v1536 = vmul.f32 %v1444, %v1523
        %v1537 = vmul.f32 %v1452, %v1523
        %v1538 = vmul.f32 %v1447, %v1523
        %v1539 = vmul.f32 %v1453, %v1523
        %v1540 = vadd.f32 %v1506, %v1524
        %v1541 = vadd.f32 %v1507, %v1525
        %v1542 = vadd.f32 %v1508, %v1526
        %v1543 = vadd.f32 %v1509, %v1527
        %v1544 = vadd.f32 %v1510, %v1528
        %v1545 = vadd.f32 %v1511, %v1529
        %v1546 = vadd.f32 %v1512, %v1530
        %v1547 = vadd.f32 %v1513, %v1531
        %v1548 = vadd.f32 %v1514, %v1532
        %v1549 = vadd.f32 %v1515, %v1533
        %v1550 = vadd.f32 %v1516, %v1534
        %v1551 = vadd.f32 %v1517, %v1535
        %v1552 = vadd.f32 %v1518, %v1536
        %v1553 = vadd.f32 %v1519, %v1537
        %v1554 = vadd.f32 %v1520, %v1538
        %v1555 = vadd.f32 %v1521, %v1539
        %v1560 = vrot.slane %v1205, 6
        %v1561 = vrot.slane %v1206, 6
        %v1562 = vsel %vm960, %v1560, %v1561
        %v1563 = vrot.slane %v1207, 6
        %v1564 = vrot.slane %v1208, 6
        %v1565 = vsel %vm960, %v1563, %v1564
        %v1570 = vsel %vm960, 0.0, %v1560
        %v1571 = vsel %vm960, 0.0, %v1563
        %v1572 = vrot.slane %v1205, 2
        %v1573 = vrot.slane %v1206, 2
        %v1574 = vsel %vm1273, %v1572, %v1573
        %v1575 = vrot.slane %v1207, 2
        %v1576 = vrot.slane %v1208, 2
        %v1577 = vsel %vm1273, %v1575, %v1576
        %v1582 = vsel %vm1273, %v1573, 0.0
        %v1583 = vsel %vm1273, %v1576, 0.0
        %v1584 = vld [vmem:[%s2 + $0x6] sm:$0x1]
        %v1585 = vperm.slane %v1584, 0
        %v1586 = vmul.f32 %v1269, %v1585
        %v1587 = vmul.f32 %v1239, %v1585
        %v1588 = vmul.f32 %v1270, %v1585
        %v1589 = vmul.f32 %v1242, %v1585
        %v1590 = vmul.f32 %v1271, %v1585
        %v1591 = vmul.f32 %v1245, %v1585
        %v1592 = vmul.f32 %v1272, %v1585
        %v1593 = vmul.f32 %v1248, %v1585
        %v1594 = vmul.f32 %v1440, %v1585
        %v1595 = vmul.f32 %v1432, %v1585
        %v1596 = vmul.f32 %v1441, %v1585
        %v1597 = vmul.f32 %v1435, %v1585
        %v1598 = vmul.f32 %v1570, %v1585
        %v1599 = vmul.f32 %v1562, %v1585
        %v1600 = vmul.f32 %v1571, %v1585
        %v1601 = vmul.f32 %v1565, %v1585
        %v1602 = vadd.f32 %v1540, %v1586
        %v1603 = vadd.f32 %v1541, %v1587
        %v1604 = vadd.f32 %v1542, %v1588
        %v1605 = vadd.f32 %v1543, %v1589
        %v1606 = vadd.f32 %v1544, %v1590
        %v1607 = vadd.f32 %v1545, %v1591
        %v1608 = vadd.f32 %v1546, %v1592
        %v1609 = vadd.f32 %v1547, %v1593
        %v1610 = vadd.f32 %v1548, %v1594
        %v1611 = vadd.f32 %v1549, %v1595
        %v1612 = vadd.f32 %v1550, %v1596
        %v1613 = vadd.f32 %v1551, %v1597
        %v1614 = vadd.f32 %v1552, %v1598
        %v1615 = vadd.f32 %v1553, %v1599
        %v1616 = vadd.f32 %v1554, %v1600
        %v1617 = vadd.f32 %v1555, %v1601
        %v1618 = vld [vmem:[%s2 + $0x7] sm:$0x1]
        %v1619 = vperm.slane %v1618, 0
        %v1620 = vmul.f32 %v1193, %v1619
        %v1621 = vmul.f32 %v1194, %v1619
        %v1622 = vmul.f32 %v1195, %v1619
        %v1623 = vmul.f32 %v1196, %v1619
        %v1624 = vmul.f32 %v1197, %v1619
        %v1625 = vmul.f32 %v1198, %v1619
        %v1626 = vmul.f32 %v1199, %v1619
        %v1627 = vmul.f32 %v1200, %v1619
        %v1628 = vmul.f32 %v1201, %v1619
        %v1629 = vmul.f32 %v1202, %v1619
        %v1630 = vmul.f32 %v1203, %v1619
        %v1631 = vmul.f32 %v1204, %v1619
        %v1632 = vmul.f32 %v1205, %v1619
        %v1633 = vmul.f32 %v1206, %v1619
        %v1634 = vmul.f32 %v1207, %v1619
        %v1635 = vmul.f32 %v1208, %v1619
        %v1636 = vadd.f32 %v1602, %v1620
        %v1637 = vadd.f32 %v1603, %v1621
        %v1638 = vadd.f32 %v1604, %v1622
        %v1639 = vadd.f32 %v1605, %v1623
        %v1640 = vadd.f32 %v1606, %v1624
        %v1641 = vadd.f32 %v1607, %v1625
        %v1642 = vadd.f32 %v1608, %v1626
        %v1643 = vadd.f32 %v1609, %v1627
        %v1644 = vadd.f32 %v1610, %v1628
        %v1645 = vadd.f32 %v1611, %v1629
        %v1646 = vadd.f32 %v1612, %v1630
        %v1647 = vadd.f32 %v1613, %v1631
        %v1648 = vadd.f32 %v1614, %v1632
        %v1649 = vadd.f32 %v1615, %v1633
        %v1650 = vadd.f32 %v1616, %v1634
        %v1651 = vadd.f32 %v1617, %v1635
        %v1652 = vld [vmem:[%s2 + $0x8] sm:$0x1]
        %v1653 = vperm.slane %v1652, 0
        %v1654 = vmul.f32 %v1288, %v1653
        %v1655 = vmul.f32 %v1318, %v1653
        %v1656 = vmul.f32 %v1291, %v1653
        %v1657 = vmul.f32 %v1319, %v1653
        %v1658 = vmul.f32 %v1294, %v1653
        %v1659 = vmul.f32 %v1320, %v1653
        %v1660 = vmul.f32 %v1297, %v1653
        %v1661 = vmul.f32 %v1321, %v1653
        %v1662 = vmul.f32 %v1444, %v1653
        %v1663 = vmul.f32 %v1452, %v1653
        %v1664 = vmul.f32 %v1447, %v1653
        %v1665 = vmul.f32 %v1453, %v1653
        %v1666 = vmul.f32 %v1574, %v1653
        %v1667 = vmul.f32 %v1582, %v1653
        %v1668 = vmul.f32 %v1577, %v1653
        %v1669 = vmul.f32 %v1583, %v1653
        %v1670 = vadd.f32 %v1636, %v1654
        %v1671 = vadd.f32 %v1637, %v1655
        %v1672 = vadd.f32 %v1638, %v1656
        %v1673 = vadd.f32 %v1639, %v1657
        %v1674 = vadd.f32 %v1640, %v1658
        %v1675 = vadd.f32 %v1641, %v1659
        %v1676 = vadd.f32 %v1642, %v1660
        %v1677 = vadd.f32 %v1643, %v1661
        %v1678 = vadd.f32 %v1644, %v1662
        %v1679 = vadd.f32 %v1645, %v1663
        %v1680 = vadd.f32 %v1646, %v1664
        %v1681 = vadd.f32 %v1647, %v1665
        %v1682 = vadd.f32 %v1648, %v1666
        %v1683 = vadd.f32 %v1649, %v1667
        %v1684 = vadd.f32 %v1650, %v1668
        %v1685 = vadd.f32 %v1651, %v1669
        %1702 = vrot.lane.b32.xlu0 %v1670, 124
        %v1703 = vpop.permute.xlu0 %1702
        %1704 = vrot.lane.b32.xlu0 %v1671, 124
        %v1705 = vpop.permute.xlu0 %1704
        %1706 = vrot.lane.b32.xlu0 %v1672, 124
        %v1707 = vpop.permute.xlu0 %1706
        %1708 = vrot.lane.b32.xlu0 %v1673, 124
        %v1709 = vpop.permute.xlu0 %1708
        %1710 = vrot.lane.b32.xlu0 %v1674, 124
        %v1711 = vpop.permute.xlu0 %1710
        %1712 = vrot.lane.b32.xlu0 %v1675, 124
        %v1713 = vpop.permute.xlu0 %1712
        %1714 = vrot.lane.b32.xlu0 %v1676, 124
        %v1715 = vpop.permute.xlu0 %1714
        %1716 = vrot.lane.b32.xlu0 %v1677, 124
        %v1717 = vpop.permute.xlu0 %1716
        %1718 = vrot.lane.b32.xlu0 %v1678, 124
        %v1719 = vpop.permute.xlu0 %1718
        %1720 = vrot.lane.b32.xlu0 %v1679, 124
        %v1721 = vpop.permute.xlu0 %1720
        %1722 = vrot.lane.b32.xlu0 %v1680, 124
        %v1723 = vpop.permute.xlu0 %1722
        %1724 = vrot.lane.b32.xlu0 %v1681, 124
        %v1725 = vpop.permute.xlu0 %1724
        %1726 = vrot.lane.b32.xlu0 %v1682, 124
        %v1727 = vpop.permute.xlu0 %1726
        %1728 = vrot.lane.b32.xlu0 %v1683, 124
        %v1729 = vpop.permute.xlu0 %1728
        %1730 = vrot.lane.b32.xlu0 %v1684, 124
        %v1731 = vpop.permute.xlu0 %1730
        %1732 = vrot.lane.b32.xlu0 %v1685, 124
        %v1733 = vpop.permute.xlu0 %1732
        %v1750 = vmul.f32 %v1670, %v1703
        %v1751 = vmul.f32 %v1671, %v1705
        %v1752 = vmul.f32 %v1672, %v1707
        %v1753 = vmul.f32 %v1673, %v1709
        %v1754 = vmul.f32 %v1674, %v1711
        %v1755 = vmul.f32 %v1675, %v1713
        %v1756 = vmul.f32 %v1676, %v1715
        %v1757 = vmul.f32 %v1677, %v1717
        %v1758 = vmul.f32 %v1678, %v1719
        %v1759 = vmul.f32 %v1679, %v1721
        %v1760 = vmul.f32 %v1680, %v1723
        %v1761 = vmul.f32 %v1681, %v1725
        %v1762 = vmul.f32 %v1682, %v1727
        %v1763 = vmul.f32 %v1683, %v1729
        %v1764 = vmul.f32 %v1684, %v1731
        %v1765 = vmul.f32 %v1685, %v1733
        %1766 = vst.msk [vmem:[%s274] sm:$0xff] %vm301, %v1750
        %1767 = vst.msk [vmem:[%s274 + $0x8] sm:$0xff] %vm301, %v1751
        %1768 = vst.msk [vmem:[%s274 + $0x10] sm:$0xff] %vm301, %v1752
        %1769 = vst.msk [vmem:[%s274 + $0x18] sm:$0xff] %vm301, %v1753
        %1770 = vst.msk [vmem:[%s274 + $0x20] sm:$0xff] %vm301, %v1754
        %1771 = vst.msk [vmem:[%s274 + $0x28] sm:$0xff] %vm301, %v1755
        %1772 = vst.msk [vmem:[%s274 + $0x30] sm:$0xff] %vm301, %v1756
        %1773 = vst.msk [vmem:[%s274 + $0x38] sm:$0xff] %vm301, %v1757
        %1774 = vst.msk [vmem:[%s274 + $0x40] sm:$0xff] %vm301, %v1758
        %1775 = vst.msk [vmem:[%s274 + $0x48] sm:$0xff] %vm301, %v1759
        %1776 = vst.msk [vmem:[%s274 + $0x50] sm:$0xff] %vm301, %v1760
        %1777 = vst.msk [vmem:[%s274 + $0x58] sm:$0xff] %vm301, %v1761
        %1778 = vst.msk [vmem:[%s274 + $0x60] sm:$0xff] %vm301, %v1762
        %1779 = vst.msk [vmem:[%s274 + $0x68] sm:$0xff] %vm301, %v1763
        %1780 = vst.msk [vmem:[%s274 + $0x70] sm:$0xff] %vm301, %v1764
        %1781 = vst.msk [vmem:[%s274 + $0x78] sm:$0xff] %vm301, %v1765
        %v1782 = vsel %vm301, %v1750, 0.0
        %v1783 = vsel %vm301, %v1751, 0.0
        %v1784 = vadd.f32 %v1782, %v1783
        %v1785 = vsel %vm301, %v1752, 0.0
        %v1786 = vadd.f32 %v1784, %v1785
        %v1787 = vsel %vm301, %v1753, 0.0
        %v1788 = vadd.f32 %v1786, %v1787
        %v1789 = vsel %vm301, %v1754, 0.0
        %v1790 = vadd.f32 %v1788, %v1789
        %v1791 = vsel %vm301, %v1755, 0.0
        %v1792 = vadd.f32 %v1790, %v1791
        %v1793 = vsel %vm301, %v1756, 0.0
        %v1794 = vadd.f32 %v1792, %v1793
        %v1795 = vsel %vm301, %v1757, 0.0
        %v1796 = vadd.f32 %v1794, %v1795
        %v1797 = vsel %vm301, %v1758, 0.0
        %v1798 = vadd.f32 %v1796, %v1797
        %v1799 = vsel %vm301, %v1759, 0.0
        %v1800 = vadd.f32 %v1798, %v1799
        %v1801 = vsel %vm301, %v1760, 0.0
        %v1802 = vadd.f32 %v1800, %v1801
        %v1803 = vsel %vm301, %v1761, 0.0
        %v1804 = vadd.f32 %v1802, %v1803
        %v1805 = vsel %vm301, %v1762, 0.0
        %v1806 = vadd.f32 %v1804, %v1805
        %v1807 = vsel %vm301, %v1763, 0.0
        %v1808 = vadd.f32 %v1806, %v1807
        %v1809 = vsel %vm301, %v1764, 0.0
        %v1810 = vadd.f32 %v1808, %v1809
        %v1811 = vsel %vm301, %v1765, 0.0
        %v1812 = vadd.f32 %v1810, %v1811
        %v1813 = vrot.slane %v1812, 4
        %v1814 = vadd.f32 %v1812, %v1813
        %v1815 = vrot.slane %v1814, 2
        %v1816 = vadd.f32 %v1814, %v1815
        %v1817 = vrot.slane %v1816, 1
        %v1818 = vadd.f32 %v1816, %v1817
        %vm1819 = vcmask 24576
        %1820 = vst.msk [vmem:[%s255] sm:$0x1] %vm1819, %v1818
        %s1821 = smul.u32 8, %s25
        %p1822 = scmp.lt.s32.totalorder %s24, 1
        %s1823 = scalar_select %p1822, %s24, 1
        %p1824 = scmp.lt.s32.totalorder %s1821, 15
        %s1825 = scalar_select %p1824, %s1821, 15
        %s1826 = smul.addr %s1825, 2
        %s1827 = smul.addr %s1823, 32
        %s1828 = sadd.s32 %s1826, %s1827
        %s1829 = smul.addr %s1828, 8
        %s1830 = scalar_lea.vmem %s4, %s1829
        %s1831 = sand.u32 %s161, 1
        %s1832 = scalar_lea.sflag [#allocation3], %s1831
        %s1833 = sand.u32 %s161, 1
        %s1834 = scalar_lea.vmem [#allocation2], %s1833
        // Predicated region
        $region37: #{tpu_custom_call.1} parent=35 // pred_check
          %p1835 = pneg %p143
        $region38: #{tpu_custom_call.1} parent=35 // pred_check_branch
          %1837 = sbr.rel (%p1835) target = $region40
        $region39: #{tpu_custom_call.1} parent=35 // pred_region
          %s1838 = smul.u32 8, %s25
        $region40: #{tpu_custom_call.1} parent=35 // pred_fallthru
          _
        // Predicated region
        $region41: #{tpu_custom_call.1} parent=35 // pred_check
          %p1839 = pneg %p171
        $region42: #{tpu_custom_call.1} parent=35 // pred_check_branch
          %1841 = sbr.rel (%p1839) target = $region44
        $region43: #{tpu_custom_call.1} parent=35 // pred_region
          %1843 = vsyncadd %s1832, 0
          %s1844 = smul.addr %s24, 2
          %s1845 = sadd.s32 %s25, %s1844
          %s1846 = scalar_lea.hbm %s5, %s1845
          %s1848 = sshll.u32 %s1834, 4
          %s1849 = int_to_ptr.vmem [resolvable:$true] %s1848
          %s1850 = sshll.u32 %s1846, 4
          %s1851 = int_to_ptr.hbm [resolvable:$true] %s1850
          %1853 = dma.vmem_to_hbm [thread:$0]  %s1849, 16, %s1851, %s1832
        $region44: #{tpu_custom_call.1} parent=35 // pred_fallthru
          _
      $region36: #{tpu_custom_call.1} parent=5 // pred_fallthru
        _
      %p1854 = scmp.le.s32.totalorder 2, %s15
      // Predicated region
      $region45: #{tpu_custom_call.1} parent=5 // pred_check
        %p1855 = pneg %p1854
      $region46: #{tpu_custom_call.1} parent=5 // pred_check_branch
        %1857 = sbr.rel (%p1855) target = $region48
      $region47: #{tpu_custom_call.1} parent=5 // pred_region
        %s1858 = ssub.s32 %s15, 2
        // Predicated region
        $region49: #{tpu_custom_call.1} parent=47 // pred_check
          %p1859 = pneg %p149
        $region50: #{tpu_custom_call.1} parent=47 // pred_check_branch
          %1861 = sbr.rel (%p1859) target = $region52
        $region51: #{tpu_custom_call.1} parent=47 // pred_region
          %s1862 = smul.u32 8, %s27
          %p1863 = scmp.lt.s32.totalorder %s26, 1
          %s1864 = scalar_select %p1863, %s26, 1
          %p1865 = scmp.lt.s32.totalorder %s1862, 15
          %s1866 = scalar_select %p1865, %s1862, 15
          %s1867 = smul.addr %s1866, 2
          %s1868 = smul.addr %s1864, 32
          %s1869 = sadd.s32 %s1867, %s1868
          %s1870 = smul.addr %s1869, 8
          %s1871 = scalar_lea.vmem %s4, %s1870
        $region52: #{tpu_custom_call.1} parent=47 // pred_fallthru
          _
        // Predicated region
        $region53: #{tpu_custom_call.1} parent=47 // pred_check
          %p1872 = pneg %p177
        $region54: #{tpu_custom_call.1} parent=47 // pred_check_branch
          %1874 = sbr.rel (%p1872) target = $region56
        $region55: #{tpu_custom_call.1} parent=47 // pred_region
          %s1875 = sand.u32 %s162, 1
          %s1876 = scalar_lea.sflag [#allocation3], %s1875
          %s1877 = sand.u32 %s162, 1
          %s1878 = scalar_lea.vmem [#allocation2], %s1877
          %1880 = dma.done %s1876, 16
        $region56: #{tpu_custom_call.1} parent=47 // pred_fallthru
          _
      $region48: #{tpu_custom_call.1} parent=5 // pred_fallthru
        _
    $region6: #{tpu_custom_call.1} parent=1 // loop_footer
      %s19 = sadd.s32 1, %s15
    $region7: #{tpu_custom_call.1} parent=1 // loop_footer_branch
      %14 = sbr.rel target = $region3
    $region8: #{tpu_custom_call.1} parent=1 // loop_exit
      _
    %1881 = vsyncpa [#allocation3], 1
    %s1882 = scalar_lea.sflag [#allocation3], 1
    %1883 = vsyncpa %s1882, 1

</llo_original>
